<compile_context>
chip_gen: v7x
topology: tpu7x:2x2x1
jax: 0.10.0
libtpu: 0.0.40
codegen_flags: <defaults>
</compile_context>

<pallas_src>
import math
from functools import partial

import jax
import jax.numpy as jnp
from jax.experimental import pallas as pl
from jax.experimental.pallas import tpu as pltpu

EPS = 1e-5
ONEBYONECHANNELS = 4
N_PAD = 8          # sublane-aligned batch padding
OUT_PAD = 128      # lane-dense logits padding


# ---------------------------------------------------------------------------
# In-kernel math helpers
# ---------------------------------------------------------------------------
def _erf(x):
    # Abramowitz & Stegun 7.1.26 polynomial erf (|err| < 1.5e-7 in f32).
    # lax.erf has no Mosaic lowering; matches PyTorch's exact erf-GELU to ~1e-7.
    a1, a2, a3, a4, a5 = (0.254829592, -0.284496736, 1.421413741,
                          -1.453152027, 1.061405429)
    p = 0.3275911
    sgn = jnp.where(x >= 0.0, 1.0, -1.0)
    ax = jnp.abs(x)
    t = 1.0 / (1.0 + p * ax)
    poly = ((((a5 * t + a4) * t + a3) * t + a2) * t + a1) * t
    return sgn * (1.0 - poly * jnp.exp(-ax * ax))


def _gelu_exact(x):
    # F.gelu default (exact / erf form): 0.5*x*(1 + erf(x/sqrt(2)))
    return 0.5 * x * (1.0 + _erf(x * (1.0 / math.sqrt(2.0))))


# ---------------------------------------------------------------------------
# Fused kernel builder.
#
# Feature slab layout: rows are (channel, padded-batch) pairs, row = c*N_PAD+n,
# lanes are the length axis L (=128).  All batch padding / block-diagonal
# weight expansion is done host-side once, so every contraction here is a
# plain 2-D jnp.dot on the MXU.
#
# Kernel refs (inputs, outputs, scratch):
#   x_ref      : (C_in*Np, L)                        input slab
#   wcat_b     : (C_out_b*Np, K_b*C_in_b*Np)         tap-concatenated conv wts
#   w1_ref     : (C1*Np, C_tot*Np)                   expanded 1x1 conv weight
#   b1_ref     : (C1*Np, 1)                          expanded 1x1 conv bias
#   wl_ref     : (C1*L, OUT_PAD)                     stacked Linear weight
#   bl_ref     : (1, OUT_PAD)                        Linear bias (lane-padded)
#   feat_ref   : (C_tot*Np, L)      OUT              final dense feature slab
#   logits_ref : (Np, OUT_PAD)      OUT              lane-dense head output
#   stack_ref  : (max_stack, L)     SCRATCH          stacked shifted taps
#   gcat_ref   : (Np, C1*L)         SCRATCH          lane-concatenated GELU out
# ---------------------------------------------------------------------------
def make_fused_kernel(inp_channels, conv_channels, kern_sizes, n_pad, l, c1,
                      out_pad):
    n_blocks = len(conv_channels)
    # Distinct nonzero lane shifts used by any block ('same' padding taps).
    all_ds = sorted({k - (ks - 1) // 2 for ks in kern_sizes
                     for k in range(ks)} - {0})

    def kernel(*refs):
        x_ref = refs[0]
        wcat_refs = refs[1:1 + n_blocks]
        (w1_ref, b1_ref, wl_ref, bl_ref,
         feat_ref, logits_ref, stack_ref, gcat_ref) = refs[1 + n_blocks:]

        # Hoisted boundary masks: one (1, L) mask per distinct nonzero shift,
        # reused for every channel/tap/block (avoids re-emitted iota+compares).
        lane = jax.lax.broadcasted_iota(jnp.int32, (1, l), 1)
        masks = {d: ((lane + d >= 0) & (lane + d < l)).astype(jnp.float32)
                 for d in all_ds}

        # Seed the feature slab with the input channels (dense-concat prefix).
        feat_ref[0:inp_channels * n_pad, :] = x_ref[...]

        c_in = inp_channels
        for b in range(n_blocks):
            k_size = kern_sizes[b]
            c_out = conv_channels[b]
            rows_in = c_in * n_pad
            rows_out = c_out * n_pad
            left = (k_size - 1) // 2

            # InstanceNorm1d (biased var, eps inside rsqrt, no affine) + ReLU.
            # Zero padding rows stay exactly zero (0 * rsqrt(eps) = 0).
            xb = feat_ref[0:rows_in, :]
            mean = jnp.mean(xb, axis=-1, keepdims=True)
            diff = xb - mean
            var = jnp.mean(diff * diff, axis=-1, keepdims=True)
            h = jnp.maximum(diff * jax.lax.rsqrt(var + EPS), 0.0)

            # Conv1d 'same': stack the K shifted+masked copies (one XLU roll +
            # one VPU mask-mul per tap) into the 8-aligned scratch ...
            for k in range(k_size):
                d = k - left
                if d == 0:
                    sh = h
                else:
                    sh = pltpu.roll(h, shift=(-d) % l, axis=1) * masks[d]
                stack_ref[k * rows_in:(k + 1) * rows_in, :] = sh

            # ... then ONE MXU matmul over the fused (tap x channel) axis.
            acc = jnp.dot(wcat_refs[b][...],
                          stack_ref[0:k_size * rows_in, :],
                          preferred_element_type=jnp.float32)

            # torch.cat([x, out], dim=1): append new channels in place
            # (rows_in is a multiple of 8 -> tile-aligned store).
            feat_ref[rows_in:rows_in + rows_out, :] = acc
            c_in += c_out

        # TODO(synk): F.dropout1d (droprate > 0, training) not implemented;
        # default droprate=0.0 skips it.

        # ---- Head: 1x1 conv (+bias) -> exact GELU -> flatten -> Linear ----
        rows_tot = c_in * n_pad
        y = jnp.dot(w1_ref[...], feat_ref[0:rows_tot, :],
                    preferred_element_type=jnp.float32) + b1_ref[...]
        g = _gelu_exact(y)                                   # (C1*Np, L)

        # Lane-concatenate the C1 channel blocks (128-aligned lane offsets),
        # then a single (Np, C1*L) x (C1*L, OUT_PAD) matmul.
        for c in range(c1):
            gcat_ref[:, c * l:(c + 1) * l] = g[c * n_pad:(c + 1) * n_pad, :]
        logits_ref[...] = jnp.dot(gcat_ref[...], wl_ref[...],
                                  preferred_element_type=jnp.float32) + bl_ref[...]

    return kernel


# ---------------------------------------------------------------------------
# Host-side weight expansion: done ONCE (outside the per-call jitted path).
# ---------------------------------------------------------------------------
def prepare_params(params, n_pad=N_PAD, out_pad=OUT_PAD):
    eye = jnp.eye(n_pad, dtype=jnp.float32)

    # Per-block conv weights -> per-padded-batch block-diagonal, then the K
    # taps concatenated along the contraction axis:
    #   wcat[co*Np+n, k*Ci*Np + ci*Np+m] = w[co, ci, k] * (n == m)
    wcat_list = []
    for w in params["block_ws"]:
        co, ci, k = w.shape
        wk = jnp.transpose(w, (2, 0, 1))                         # (K, Co, Ci)
        wexp = (wk[:, :, None, :, None] * eye[None, None, :, None, :]
                ).reshape(k, co * n_pad, ci * n_pad)
        wcat = jnp.transpose(wexp, (1, 0, 2)).reshape(co * n_pad,
                                                      k * ci * n_pad)
        wcat_list.append(wcat)

    w1 = params["w1"]                                            # (C1, C_tot)
    c1, c_tot = w1.shape
    w1exp = (w1[:, None, :, None] * eye[None, :, None, :]
             ).reshape(c1 * n_pad, c_tot * n_pad)
    b1exp = jnp.repeat(params["b1"], n_pad)[:, None]             # (C1*Np, 1)

    # Linear weight (OUT, C1, L): torch.flatten(1) index = c*L + t -> stack to
    # (C1*L, OUT) and pad lanes to OUT_PAD.
    out_dim = params["wl"].shape[0]
    wl_stack = jnp.transpose(params["wl"].reshape(out_dim, -1))  # (C1*L, OUT)
    wl_stack = jnp.pad(wl_stack, ((0, 0), (0, out_pad - out_dim)))
    bl_pad = jnp.pad(params["bl"], ((0, 0), (0, out_pad - out_dim)))

    return dict(wcat=wcat_list, w1exp=w1exp, b1exp=b1exp,
                wl_stack=wl_stack, bl_pad=bl_pad)


# ---------------------------------------------------------------------------
# Forward wrapper: input slab transform + single grid-less pallas_call.
# ---------------------------------------------------------------------------
def densenet_forward(prepared, x, *, conv_channels, kern_sizes, out_dim,
                     n_pad=N_PAD, out_pad=OUT_PAD):
    N, C_in, L = x.shape
    assert N <= n_pad
    c_tot = C_in + sum(conv_channels)
    n_blocks = len(conv_channels)
    c1 = ONEBYONECHANNELS

    # (N, C, L) -> pad batch to Np -> (C*Np, L) slab, row = c*Np + n.
    xt = jnp.transpose(x, (1, 0, 2))
    xp = jnp.pad(xt, ((0, 0), (0, n_pad - N), (0, 0)))
    x2 = xp.reshape(C_in * n_pad, L)

    # Scratch size for the largest stacked (tap x channel) operand.
    c_ins, c = [], C_in
    for cc in conv_channels:
        c_ins.append(c)
        c += cc
    max_stack = max(ks * ci * n_pad for ks, ci in zip(kern_sizes, c_ins))

    kernel = make_fused_kernel(C_in, tuple(conv_channels), tuple(kern_sizes),
                               n_pad, L, c1, out_pad)
    n_inputs = 1 + n_blocks + 4
    feat2d, logits_pad = pl.pallas_call(
        kernel,
        out_shape=(jax.ShapeDtypeStruct((c_tot * n_pad, L), jnp.float32),
                   jax.ShapeDtypeStruct((n_pad, out_pad), jnp.float32)),
        in_specs=[pl.BlockSpec(memory_space=pltpu.MemorySpace.VMEM)] * n_inputs,
        out_specs=(pl.BlockSpec(memory_space=pltpu.MemorySpace.VMEM),
                   pl.BlockSpec(memory_space=pltpu.MemorySpace.VMEM)),
        scratch_shapes=[pltpu.VMEM((max_stack, L), jnp.float32),
                        pltpu.VMEM((n_pad, c1 * L), jnp.float32)],
    )(x2, *prepared["wcat"], prepared["w1exp"], prepared["b1exp"],
      prepared["wl_stack"], prepared["bl_pad"])

    # Slab (row = c*Np+n) -> (N, C_total, L); drop batch/lane padding.
    features = jnp.transpose(feat2d.reshape(c_tot, n_pad, L)[:, :N], (1, 0, 2))
    logits = logits_pad[:N, :out_dim]
    return features, logits


# ---------------------------------------------------------------------------
# Parameters (deterministic, synthetic) and a pure-JAX reference
# ---------------------------------------------------------------------------
def init_params(key, conv_channels, kern_sizes, out_dim, inp_channels, L):
    n_blocks = len(conv_channels)
    keys = jax.random.split(key, n_blocks + 4)

    block_ws = []
    in_ch = inp_channels
    for i, (c_out, ks) in enumerate(zip(conv_channels, kern_sizes)):
        block_ws.append(
            0.2 * jax.random.normal(keys[i], (c_out, in_ch, ks), jnp.float32))
        in_ch += c_out
    c_tot = in_ch

    w1 = 0.2 * jax.random.normal(keys[n_blocks],
                                 (ONEBYONECHANNELS, c_tot), jnp.float32)
    b1 = 0.1 * jax.random.normal(keys[n_blocks + 1],
                                 (ONEBYONECHANNELS,), jnp.float32)
    wl = 0.05 * jax.random.normal(keys[n_blocks + 2],
                                  (out_dim, ONEBYONECHANNELS, L), jnp.float32)
    bl = 0.1 * jax.random.normal(keys[n_blocks + 3], (1, out_dim), jnp.float32)
    return dict(block_ws=block_ws, w1=w1, b1=b1, wl=wl, bl=bl)


def reference_forward(params, x):
    """Pure-JAX reference (no Pallas) of the same forward pass."""
    h = x
    N, _, L = x.shape
    for w in params["block_ws"]:
        c_out, _, k_size = w.shape
        mean = jnp.mean(h, axis=-1, keepdims=True)
        var = jnp.mean((h - mean) ** 2, axis=-1, keepdims=True)
        a = jnp.maximum((h - mean) / jnp.sqrt(var + EPS), 0.0)
        left = (k_size - 1) // 2
        right = k_size - 1 - left
        ap = jnp.pad(a, ((0, 0), (0, 0), (left, right)))
        out = jnp.zeros((N, c_out, L), jnp.float32)
        for k in range(k_size):
            out = out + jnp.einsum('oc,ncl->nol', w[:, :, k], ap[:, :, k:k + L])
        h = jnp.concatenate([h, out], axis=1)
    y = jnp.einsum('oc,ncl->nol', params["w1"], h) + params["b1"][None, :, None]
    g = 0.5 * y * (1.0 + jax.lax.erf(y / jnp.sqrt(2.0)))
    flat = g.reshape(N, -1)
    wl2 = params["wl"].reshape(params["wl"].shape[0], -1)
    logits = flat @ wl2.T + params["bl"][0]
    return h, logits


if __name__ == "__main__":
    # Small shapes consistent with the module's forward pass.
    B, C_IN, L = 2, 1, 128
    CONV_CHANNELS = (4, 4)
    KERN_SIZES = (3, 5)
    OUT_DIM = 8

    key = jax.random.PRNGKey(0)
    k_x, k_p = jax.random.split(key)
    x = jax.random.normal(k_x, (B, C_IN, L), jnp.float32)
    params = init_params(k_p, CONV_CHANNELS, KERN_SIZES, OUT_DIM, C_IN, L)

    # Weight expansion hoisted out of the per-call path (computed once).
    prepared = jax.tree_util.tree_map(jax.block_until_ready,
                                      prepare_params(params))

    fwd = jax.jit(partial(densenet_forward, conv_channels=CONV_CHANNELS,
                          kern_sizes=KERN_SIZES, out_dim=OUT_DIM))
    feats, logits = fwd(prepared, x)
    feats, logits = jax.block_until_ready((feats, logits))

    assert logits.shape == (B, OUT_DIM), logits.shape
    assert feats.shape == (B, C_IN + sum(CONV_CHANNELS), L), feats.shape
    assert bool(jnp.all(jnp.isfinite(logits)))

    # Pure-JAX reference check (loose tolerance: erf polynomial ~1.5e-7 and
    # matmul reassociation are the only expected deviations).
    ref_feats, ref_logits = reference_forward(params, x)
    f_err = float(jnp.max(jnp.abs(feats - ref_feats)))
    l_err = float(jnp.max(jnp.abs(logits - ref_logits)))
    assert f_err < 1e-3, f"feature mismatch vs reference: {f_err}"
    assert l_err < 1e-3, f"logit mismatch vs reference: {l_err}"

    print("KERNEL_OK")
</pallas_src>

<mosaic_0001>
module attributes {stable_mosaic.version = 11 : i64} {
  func.func @kernel(%arg0: memref<8x128xf32, #tpu.memory_space<vmem>>, %arg1: memref<32x24xf32, #tpu.memory_space<vmem>>, %arg2: memref<32x200xf32, #tpu.memory_space<vmem>>, %arg3: memref<32x72xf32, #tpu.memory_space<vmem>>, %arg4: memref<32x1xf32, #tpu.memory_space<vmem>>, %arg5: memref<512x128xf32, #tpu.memory_space<vmem>>, %arg6: memref<1x128xf32, #tpu.memory_space<vmem>>, %arg7: memref<72x128xf32, #tpu.memory_space<vmem>>, %arg8: memref<8x128xf32, #tpu.memory_space<vmem>>, %arg9: memref<200x128xf32, #tpu.memory_space<vmem>>, %arg10: memref<8x512xf32, #tpu.memory_space<vmem>>) attributes {dimension_semantics = [], scalar_prefetch = 0 : i64, scratch_operands = 2 : i64, tpu.core_type = #tpu.core_type<tc>} {
    %0 = tpu.iota {dimensions = array<i32: 1>} : vector<1x128xi32>
    %c-2_i32 = arith.constant -2 : i32
    %1 = vector.broadcast %c-2_i32 : i32 to vector<1x128xi32>
    %2 = arith.addi %0, %1 : vector<1x128xi32>
    %c0_i32 = arith.constant 0 : i32
    %3 = vector.broadcast %c0_i32 : i32 to vector<1x128xi32>
    %4 = arith.cmpi sge, %2, %3 : vector<1x128xi32>
    %c-2_i32_0 = arith.constant -2 : i32
    %5 = vector.broadcast %c-2_i32_0 : i32 to vector<1x128xi32>
    %6 = arith.addi %0, %5 : vector<1x128xi32>
    %c128_i32 = arith.constant 128 : i32
    %7 = vector.broadcast %c128_i32 : i32 to vector<1x128xi32>
    %8 = arith.cmpi slt, %6, %7 : vector<1x128xi32>
    %9 = arith.andi %4, %8 : vector<1x128xi1>
    %10 = arith.extui %9 : vector<1x128xi1> to vector<1x128xi32>
    %11 = arith.sitofp %10 : vector<1x128xi32> to vector<1x128xf32>
    %c-1_i32 = arith.constant -1 : i32
    %12 = vector.broadcast %c-1_i32 : i32 to vector<1x128xi32>
    %13 = arith.addi %0, %12 : vector<1x128xi32>
    %c0_i32_1 = arith.constant 0 : i32
    %14 = vector.broadcast %c0_i32_1 : i32 to vector<1x128xi32>
    %15 = arith.cmpi sge, %13, %14 : vector<1x128xi32>
    %c-1_i32_2 = arith.constant -1 : i32
    %16 = vector.broadcast %c-1_i32_2 : i32 to vector<1x128xi32>
    %17 = arith.addi %0, %16 : vector<1x128xi32>
    %c128_i32_3 = arith.constant 128 : i32
    %18 = vector.broadcast %c128_i32_3 : i32 to vector<1x128xi32>
    %19 = arith.cmpi slt, %17, %18 : vector<1x128xi32>
    %20 = arith.andi %15, %19 : vector<1x128xi1>
    %21 = arith.extui %20 : vector<1x128xi1> to vector<1x128xi32>
    %22 = arith.sitofp %21 : vector<1x128xi32> to vector<1x128xf32>
    %c1_i32 = arith.constant 1 : i32
    %23 = vector.broadcast %c1_i32 : i32 to vector<1x128xi32>
    %24 = arith.addi %0, %23 : vector<1x128xi32>
    %c0_i32_4 = arith.constant 0 : i32
    %25 = vector.broadcast %c0_i32_4 : i32 to vector<1x128xi32>
    %26 = arith.cmpi sge, %24, %25 : vector<1x128xi32>
    %c1_i32_5 = arith.constant 1 : i32
    %27 = vector.broadcast %c1_i32_5 : i32 to vector<1x128xi32>
    %28 = arith.addi %0, %27 : vector<1x128xi32>
    %c128_i32_6 = arith.constant 128 : i32
    %29 = vector.broadcast %c128_i32_6 : i32 to vector<1x128xi32>
    %30 = arith.cmpi slt, %28, %29 : vector<1x128xi32>
    %31 = arith.andi %26, %30 : vector<1x128xi1>
    %32 = arith.extui %31 : vector<1x128xi1> to vector<1x128xi32>
    %33 = arith.sitofp %32 : vector<1x128xi32> to vector<1x128xf32>
    %c2_i32 = arith.constant 2 : i32
    %34 = vector.broadcast %c2_i32 : i32 to vector<1x128xi32>
    %35 = arith.addi %0, %34 : vector<1x128xi32>
    %c0_i32_7 = arith.constant 0 : i32
    %36 = vector.broadcast %c0_i32_7 : i32 to vector<1x128xi32>
    %37 = arith.cmpi sge, %35, %36 : vector<1x128xi32>
    %c2_i32_8 = arith.constant 2 : i32
    %38 = vector.broadcast %c2_i32_8 : i32 to vector<1x128xi32>
    %39 = arith.addi %0, %38 : vector<1x128xi32>
    %c128_i32_9 = arith.constant 128 : i32
    %40 = vector.broadcast %c128_i32_9 : i32 to vector<1x128xi32>
    %41 = arith.cmpi slt, %39, %40 : vector<1x128xi32>
    %42 = arith.andi %37, %41 : vector<1x128xi1>
    %43 = arith.extui %42 : vector<1x128xi1> to vector<1x128xi32>
    %44 = arith.sitofp %43 : vector<1x128xi32> to vector<1x128xf32>
    %c0 = arith.constant 0 : index
    %c0_10 = arith.constant 0 : index
    %45 = vector.load %arg0[%c0, %c0_10] : memref<8x128xf32, #tpu.memory_space<vmem>>, vector<8x128xf32>
    %c0_11 = arith.constant 0 : index
    %c0_12 = arith.constant 0 : index
    %46 = vector.load %arg7[%c0_11, %c0_12] : memref<72x128xf32, #tpu.memory_space<vmem>>, vector<8x128xf32>
    tpu.vector_store %arg7[%c0_11, %c0_12], %45 {strides = array<i32>} : memref<72x128xf32, #tpu.memory_space<vmem>>, vector<8x128xf32>,
    %c0_13 = arith.constant 0 : index
    %c0_14 = arith.constant 0 : index
    %47 = vector.load %arg7[%c0_13, %c0_14] : memref<72x128xf32, #tpu.memory_space<vmem>>, vector<8x128xf32>
    %cst = arith.constant dense<0.000000e+00> : vector<8xf32>
    %48 = vector.multi_reduction <add>, %47, %cst [1] : vector<8x128xf32> to vector<8xf32>
    %49 = vector.shape_cast %48 : vector<8xf32> to vector<8x1xf32>
    %cst_15 = arith.constant 1.280000e+02 : f32
    %50 = vector.broadcast %cst_15 : f32 to vector<8x1xf32>
    %51 = arith.divf %49, %50 : vector<8x1xf32>
    %52 = vector.broadcast %51 : vector<8x1xf32> to vector<8x128xf32>
    %53 = arith.subf %47, %52 : vector<8x128xf32>
    %54 = arith.mulf %53, %53 : vector<8x128xf32>
    %cst_16 = arith.constant dense<0.000000e+00> : vector<8xf32>
    %55 = vector.multi_reduction <add>, %54, %cst_16 [1] : vector<8x128xf32> to vector<8xf32>
    %56 = vector.shape_cast %55 : vector<8xf32> to vector<8x1xf32>
    %cst_17 = arith.constant 1.280000e+02 : f32
    %57 = vector.broadcast %cst_17 : f32 to vector<8x1xf32>
    %58 = arith.divf %56, %57 : vector<8x1xf32>
    %cst_18 = arith.constant 9.99999974E-6 : f32
    %59 = vector.broadcast %cst_18 : f32 to vector<8x1xf32>
    %60 = arith.addf %58, %59 : vector<8x1xf32>
    %61 = math.rsqrt %60 : vector<8x1xf32>
    %62 = vector.broadcast %61 : vector<8x1xf32> to vector<8x128xf32>
    %63 = arith.mulf %53, %62 : vector<8x128xf32>
    %cst_19 = arith.constant 0.000000e+00 : f32
    %64 = vector.broadcast %cst_19 : f32 to vector<8x128xf32>
    %65 = arith.maximumf %63, %64 : vector<8x128xf32>
    %c1_i32_20 = arith.constant 1 : i32
    %66 = tpu.dynamic_rotate %65 by %c1_i32_20 dim 1 : vector<8x128xf32>, i32 -> vector<8x128xf32>
    %67 = vector.broadcast %22 : vector<1x128xf32> to vector<8x128xf32>
    %68 = arith.mulf %66, %67 : vector<8x128xf32>
    %c0_21 = arith.constant 0 : index
    %c0_22 = arith.constant 0 : index
    %69 = vector.load %arg9[%c0_21, %c0_22] : memref<200x128xf32, #tpu.memory_space<vmem>>, vector<8x128xf32>
    tpu.vector_store %arg9[%c0_21, %c0_22], %68 {strides = array<i32>} : memref<200x128xf32, #tpu.memory_space<vmem>>, vector<8x128xf32>,
    %c8 = arith.constant 8 : index
    %c0_23 = arith.constant 0 : index
    %70 = vector.load %arg9[%c8, %c0_23] : memref<200x128xf32, #tpu.memory_space<vmem>>, vector<8x128xf32>
    tpu.vector_store %arg9[%c8, %c0_23], %65 {strides = array<i32>} : memref<200x128xf32, #tpu.memory_space<vmem>>, vector<8x128xf32>,
    %c127_i32 = arith.constant 127 : i32
    %71 = tpu.dynamic_rotate %65 by %c127_i32 dim 1 : vector<8x128xf32>, i32 -> vector<8x128xf32>
    %72 = vector.broadcast %33 : vector<1x128xf32> to vector<8x128xf32>
    %73 = arith.mulf %71, %72 : vector<8x128xf32>
    %c16 = arith.constant 16 : index
    %c0_24 = arith.constant 0 : index
    %74 = vector.load %arg9[%c16, %c0_24] : memref<200x128xf32, #tpu.memory_space<vmem>>, vector<8x128xf32>
    tpu.vector_store %arg9[%c16, %c0_24], %73 {strides = array<i32>} : memref<200x128xf32, #tpu.memory_space<vmem>>, vector<8x128xf32>,
    %c0_25 = arith.constant 0 : index
    %c0_26 = arith.constant 0 : index
    %75 = vector.load %arg1[%c0_25, %c0_26] : memref<32x24xf32, #tpu.memory_space<vmem>>, vector<32x24xf32>
    %c0_27 = arith.constant 0 : index
    %c0_28 = arith.constant 0 : index
    %76 = vector.load %arg9[%c0_27, %c0_28] : memref<200x128xf32, #tpu.memory_space<vmem>>, vector<24x128xf32>
    %cst_29 = arith.constant dense<0.000000e+00> : vector<32x128xf32>
    %77 = tpu.matmul %75, %76, %cst_29 {dimension_numbers = #tpu.dot_dimension_numbers<[1], [0], [0], [1], [0, 0, 1, 1], [], []>} : vector<32x24xf32>, vector<24x128xf32>, vector<32x128xf32> -> vector<32x128xf32>
    %c8_30 = arith.constant 8 : index
    %c0_31 = arith.constant 0 : index
    %78 = vector.load %arg7[%c8_30, %c0_31] : memref<72x128xf32, #tpu.memory_space<vmem>>, vector<32x128xf32>
    tpu.vector_store %arg7[%c8_30, %c0_31], %77 {strides = array<i32>} : memref<72x128xf32, #tpu.memory_space<vmem>>, vector<32x128xf32>,
    %c0_32 = arith.constant 0 : index
    %c0_33 = arith.constant 0 : index
    %79 = vector.load %arg7[%c0_32, %c0_33] : memref<72x128xf32, #tpu.memory_space<vmem>>, vector<40x128xf32>
    %cst_34 = arith.constant dense<0.000000e+00> : vector<40xf32>
    %80 = vector.multi_reduction <add>, %79, %cst_34 [1] : vector<40x128xf32> to vector<40xf32>
    %81 = vector.shape_cast %80 : vector<40xf32> to vector<40x1xf32>
    %cst_35 = arith.constant 1.280000e+02 : f32
    %82 = vector.broadcast %cst_35 : f32 to vector<40x1xf32>
    %83 = arith.divf %81, %82 : vector<40x1xf32>
    %84 = vector.broadcast %83 : vector<40x1xf32> to vector<40x128xf32>
    %85 = arith.subf %79, %84 : vector<40x128xf32>
    %86 = arith.mulf %85, %85 : vector<40x128xf32>
    %cst_36 = arith.constant dense<0.000000e+00> : vector<40xf32>
    %87 = vector.multi_reduction <add>, %86, %cst_36 [1] : vector<40x128xf32> to vector<40xf32>
    %88 = vector.shape_cast %87 : vector<40xf32> to vector<40x1xf32>
    %cst_37 = arith.constant 1.280000e+02 : f32
    %89 = vector.broadcast %cst_37 : f32 to vector<40x1xf32>
    %90 = arith.divf %88, %89 : vector<40x1xf32>
    %cst_38 = arith.constant 9.99999974E-6 : f32
    %91 = vector.broadcast %cst_38 : f32 to vector<40x1xf32>
    %92 = arith.addf %90, %91 : vector<40x1xf32>
    %93 = math.rsqrt %92 : vector<40x1xf32>
    %94 = vector.broadcast %93 : vector<40x1xf32> to vector<40x128xf32>
    %95 = arith.mulf %85, %94 : vector<40x128xf32>
    %cst_39 = arith.constant 0.000000e+00 : f32
    %96 = vector.broadcast %cst_39 : f32 to vector<40x128xf32>
    %97 = arith.maximumf %95, %96 : vector<40x128xf32>
    %c2_i32_40 = arith.constant 2 : i32
    %98 = tpu.dynamic_rotate %97 by %c2_i32_40 dim 1 : vector<40x128xf32>, i32 -> vector<40x128xf32>
    %99 = vector.broadcast %11 : vector<1x128xf32> to vector<40x128xf32>
    %100 = arith.mulf %98, %99 : vector<40x128xf32>
    %c0_41 = arith.constant 0 : index
    %c0_42 = arith.constant 0 : index
    %101 = vector.load %arg9[%c0_41, %c0_42] : memref<200x128xf32, #tpu.memory_space<vmem>>, vector<40x128xf32>
    tpu.vector_store %arg9[%c0_41, %c0_42], %100 {strides = array<i32>} : memref<200x128xf32, #tpu.memory_space<vmem>>, vector<40x128xf32>,
    %c1_i32_43 = arith.constant 1 : i32
    %102 = tpu.dynamic_rotate %97 by %c1_i32_43 dim 1 : vector<40x128xf32>, i32 -> vector<40x128xf32>
    %103 = vector.broadcast %22 : vector<1x128xf32> to vector<40x128xf32>
    %104 = arith.mulf %102, %103 : vector<40x128xf32>
    %c40 = arith.constant 40 : index
    %c0_44 = arith.constant 0 : index
    %105 = vector.load %arg9[%c40, %c0_44] : memref<200x128xf32, #tpu.memory_space<vmem>>, vector<40x128xf32>
    tpu.vector_store %arg9[%c40, %c0_44], %104 {strides = array<i32>} : memref<200x128xf32, #tpu.memory_space<vmem>>, vector<40x128xf32>,
    %c80 = arith.constant 80 : index
    %c0_45 = arith.constant 0 : index
    %106 = vector.load %arg9[%c80, %c0_45] : memref<200x128xf32, #tpu.memory_space<vmem>>, vector<40x128xf32>
    tpu.vector_store %arg9[%c80, %c0_45], %97 {strides = array<i32>} : memref<200x128xf32, #tpu.memory_space<vmem>>, vector<40x128xf32>,
    %c127_i32_46 = arith.constant 127 : i32
    %107 = tpu.dynamic_rotate %97 by %c127_i32_46 dim 1 : vector<40x128xf32>, i32 -> vector<40x128xf32>
    %108 = vector.broadcast %33 : vector<1x128xf32> to vector<40x128xf32>
    %109 = arith.mulf %107, %108 : vector<40x128xf32>
    %c120 = arith.constant 120 : index
    %c0_47 = arith.constant 0 : index
    %110 = vector.load %arg9[%c120, %c0_47] : memref<200x128xf32, #tpu.memory_space<vmem>>, vector<40x128xf32>
    tpu.vector_store %arg9[%c120, %c0_47], %109 {strides = array<i32>} : memref<200x128xf32, #tpu.memory_space<vmem>>, vector<40x128xf32>,
    %c126_i32 = arith.constant 126 : i32
    %111 = tpu.dynamic_rotate %97 by %c126_i32 dim 1 : vector<40x128xf32>, i32 -> vector<40x128xf32>
    %112 = vector.broadcast %44 : vector<1x128xf32> to vector<40x128xf32>
    %113 = arith.mulf %111, %112 : vector<40x128xf32>
    %c160 = arith.constant 160 : index
    %c0_48 = arith.constant 0 : index
    %114 = vector.load %arg9[%c160, %c0_48] : memref<200x128xf32, #tpu.memory_space<vmem>>, vector<40x128xf32>
    tpu.vector_store %arg9[%c160, %c0_48], %113 {strides = array<i32>} : memref<200x128xf32, #tpu.memory_space<vmem>>, vector<40x128xf32>,
    %c0_49 = arith.constant 0 : index
    %c0_50 = arith.constant 0 : index
    %115 = vector.load %arg2[%c0_49, %c0_50] : memref<32x200xf32, #tpu.memory_space<vmem>>, vector<32x200xf32>
    %c0_51 = arith.constant 0 : index
    %c0_52 = arith.constant 0 : index
    %116 = vector.load %arg9[%c0_51, %c0_52] : memref<200x128xf32, #tpu.memory_space<vmem>>, vector<200x128xf32>
    %cst_53 = arith.constant dense<0.000000e+00> : vector<32x128xf32>
    %117 = tpu.matmul %115, %116, %cst_53 {dimension_numbers = #tpu.dot_dimension_numbers<[1], [0], [0], [1], [0, 0, 1, 1], [], []>} : vector<32x200xf32>, vector<200x128xf32>, vector<32x128xf32> -> vector<32x128xf32>
    %c40_54 = arith.constant 40 : index
    %c0_55 = arith.constant 0 : index
    %118 = vector.load %arg7[%c40_54, %c0_55] : memref<72x128xf32, #tpu.memory_space<vmem>>, vector<32x128xf32>
    tpu.vector_store %arg7[%c40_54, %c0_55], %117 {strides = array<i32>} : memref<72x128xf32, #tpu.memory_space<vmem>>, vector<32x128xf32>,
    %c0_56 = arith.constant 0 : index
    %c0_57 = arith.constant 0 : index
    %119 = vector.load %arg3[%c0_56, %c0_57] : memref<32x72xf32, #tpu.memory_space<vmem>>, vector<32x72xf32>
    %c0_58 = arith.constant 0 : index
    %c0_59 = arith.constant 0 : index
    %120 = vector.load %arg7[%c0_58, %c0_59] : memref<72x128xf32, #tpu.memory_space<vmem>>, vector<72x128xf32>
    %cst_60 = arith.constant dense<0.000000e+00> : vector<32x128xf32>
    %121 = tpu.matmul %119, %120, %cst_60 {dimension_numbers = #tpu.dot_dimension_numbers<[1], [0], [0], [1], [0, 0, 1, 1], [], []>} : vector<32x72xf32>, vector<72x128xf32>, vector<32x128xf32> -> vector<32x128xf32>
    %c0_61 = arith.constant 0 : index
    %c0_62 = arith.constant 0 : index
    %122 = vector.load %arg4[%c0_61, %c0_62] : memref<32x1xf32, #tpu.memory_space<vmem>>, vector<32x1xf32>
    %123 = vector.broadcast %122 : vector<32x1xf32> to vector<32x128xf32>
    %124 = arith.addf %121, %123 : vector<32x128xf32>
    %cst_63 = arith.constant 5.000000e-01 : f32
    %125 = vector.broadcast %cst_63 : f32 to vector<32x128xf32>
    %126 = arith.mulf %125, %124 : vector<32x128xf32>
    %cst_64 = arith.constant 0.707106769 : f32
    %127 = vector.broadcast %cst_64 : f32 to vector<32x128xf32>
    %128 = arith.mulf %124, %127 : vector<32x128xf32>
    %cst_65 = arith.constant 0.000000e+00 : f32
    %129 = vector.broadcast %cst_65 : f32 to vector<32x128xf32>
    %130 = arith.cmpf oge, %128, %129 : vector<32x128xf32>
    %cst_66 = arith.constant 1.000000e+00 : f32
    %cst_67 = arith.constant -1.000000e+00 : f32
    %131 = vector.broadcast %cst_66 : f32 to vector<32x128xf32>
    %132 = vector.broadcast %cst_67 : f32 to vector<32x128xf32>
    %133 = arith.select %130, %131, %132 : vector<32x128xi1>, vector<32x128xf32>
    %134 = math.absf %128 : vector<32x128xf32>
    %cst_68 = arith.constant 0.327591091 : f32
    %135 = vector.broadcast %cst_68 : f32 to vector<32x128xf32>
    %136 = arith.mulf %135, %134 : vector<32x128xf32>
    %cst_69 = arith.constant 1.000000e+00 : f32
    %137 = vector.broadcast %cst_69 : f32 to vector<32x128xf32>
    %138 = arith.addf %137, %136 : vector<32x128xf32>
    %cst_70 = arith.constant 1.000000e+00 : f32
    %139 = vector.broadcast %cst_70 : f32 to vector<32x128xf32>
    %140 = arith.divf %139, %138 : vector<32x128xf32>
    %cst_71 = arith.constant 1.06140542 : f32
    %141 = vector.broadcast %cst_71 : f32 to vector<32x128xf32>
    %142 = arith.mulf %141, %140 : vector<32x128xf32>
    %cst_72 = arith.constant -1.45315206 : f32
    %143 = vector.broadcast %cst_72 : f32 to vector<32x128xf32>
    %144 = arith.addf %142, %143 : vector<32x128xf32>
    %145 = arith.mulf %144, %140 : vector<32x128xf32>
    %cst_73 = arith.constant 1.42141378 : f32
    %146 = vector.broadcast %cst_73 : f32 to vector<32x128xf32>
    %147 = arith.addf %145, %146 : vector<32x128xf32>
    %148 = arith.mulf %147, %140 : vector<32x128xf32>
    %cst_74 = arith.constant -0.284496725 : f32
    %149 = vector.broadcast %cst_74 : f32 to vector<32x128xf32>
    %150 = arith.addf %148, %149 : vector<32x128xf32>
    %151 = arith.mulf %150, %140 : vector<32x128xf32>
    %cst_75 = arith.constant 0.254829586 : f32
    %152 = vector.broadcast %cst_75 : f32 to vector<32x128xf32>
    %153 = arith.addf %151, %152 : vector<32x128xf32>
    %154 = arith.mulf %153, %140 : vector<32x128xf32>
    %cst_76 = arith.constant 0.000000e+00 : f32
    %155 = vector.broadcast %cst_76 : f32 to vector<32x128xf32>
    %156 = arith.subf %155, %134 : vector<32x128xf32>
    %157 = arith.mulf %156, %134 : vector<32x128xf32>
    %158 = math.exp %157 : vector<32x128xf32>
    %159 = arith.mulf %154, %158 : vector<32x128xf32>
    %cst_77 = arith.constant 1.000000e+00 : f32
    %160 = vector.broadcast %cst_77 : f32 to vector<32x128xf32>
    %161 = arith.subf %160, %159 : vector<32x128xf32>
    %162 = arith.mulf %133, %161 : vector<32x128xf32>
    %cst_78 = arith.constant 1.000000e+00 : f32
    %163 = vector.broadcast %cst_78 : f32 to vector<32x128xf32>
    %164 = arith.addf %163, %162 : vector<32x128xf32>
    %165 = arith.mulf %126, %164 : vector<32x128xf32>
    %166 = vector.extract_strided_slice %165 {offsets = [0, 0], sizes = [8, 128], strides = [1, 1]} : vector<32x128xf32> to vector<8x128xf32>
    %c0_79 = arith.constant 0 : index
    %c0_80 = arith.constant 0 : index
    %167 = vector.load %arg10[%c0_79, %c0_80] : memref<8x512xf32, #tpu.memory_space<vmem>>, vector<8x128xf32>
    tpu.vector_store %arg10[%c0_79, %c0_80], %166 {strides = array<i32>} : memref<8x512xf32, #tpu.memory_space<vmem>>, vector<8x128xf32>,
    %168 = vector.extract_strided_slice %165 {offsets = [8, 0], sizes = [8, 128], strides = [1, 1]} : vector<32x128xf32> to vector<8x128xf32>
    %c0_81 = arith.constant 0 : index
    %c128 = arith.constant 128 : index
    %169 = vector.load %arg10[%c0_81, %c128] : memref<8x512xf32, #tpu.memory_space<vmem>>, vector<8x128xf32>
    tpu.vector_store %arg10[%c0_81, %c128], %168 {strides = array<i32>} : memref<8x512xf32, #tpu.memory_space<vmem>>, vector<8x128xf32>,
    %170 = vector.extract_strided_slice %165 {offsets = [16, 0], sizes = [8, 128], strides = [1, 1]} : vector<32x128xf32> to vector<8x128xf32>
    %c0_82 = arith.constant 0 : index
    %c256 = arith.constant 256 : index
    %171 = vector.load %arg10[%c0_82, %c256] : memref<8x512xf32, #tpu.memory_space<vmem>>, vector<8x128xf32>
    tpu.vector_store %arg10[%c0_82, %c256], %170 {strides = array<i32>} : memref<8x512xf32, #tpu.memory_space<vmem>>, vector<8x128xf32>,
    %172 = vector.extract_strided_slice %165 {offsets = [24, 0], sizes = [8, 128], strides = [1, 1]} : vector<32x128xf32> to vector<8x128xf32>
    %c0_83 = arith.constant 0 : index
    %c384 = arith.constant 384 : index
    %173 = vector.load %arg10[%c0_83, %c384] : memref<8x512xf32, #tpu.memory_space<vmem>>, vector<8x128xf32>
    tpu.vector_store %arg10[%c0_83, %c384], %172 {strides = array<i32>} : memref<8x512xf32, #tpu.memory_space<vmem>>, vector<8x128xf32>,
    %c0_84 = arith.constant 0 : index
    %c0_85 = arith.constant 0 : index
    %174 = vector.load %arg10[%c0_84, %c0_85] : memref<8x512xf32, #tpu.memory_space<vmem>>, vector<8x512xf32>
    %c0_86 = arith.constant 0 : index
    %c0_87 = arith.constant 0 : index
    %175 = vector.load %arg5[%c0_86, %c0_87] : memref<512x128xf32, #tpu.memory_space<vmem>>, vector<512x128xf32>
    %cst_88 = arith.constant dense<0.000000e+00> : vector<8x128xf32>
    %176 = tpu.matmul %174, %175, %cst_88 {dimension_numbers = #tpu.dot_dimension_numbers<[1], [0], [0], [1], [0, 0, 1, 1], [], []>} : vector<8x512xf32>, vector<512x128xf32>, vector<8x128xf32> -> vector<8x128xf32>
    %c0_89 = arith.constant 0 : index
    %c0_90 = arith.constant 0 : index
    %177 = vector.load %arg6[%c0_89, %c0_90] : memref<1x128xf32, #tpu.memory_space<vmem>>, vector<1x128xf32>
    %178 = vector.broadcast %177 : vector<1x128xf32> to vector<8x128xf32>
    %179 = arith.addf %176, %178 : vector<8x128xf32>
    %c0_91 = arith.constant 0 : index
    %c0_92 = arith.constant 0 : index
    %180 = vector.load %arg8[%c0_91, %c0_92] : memref<8x128xf32, #tpu.memory_space<vmem>>, vector<8x128xf32>
    tpu.vector_store %arg8[%c0_91, %c0_92], %179 {strides = array<i32>} : memref<8x128xf32, #tpu.memory_space<vmem>>, vector<8x128xf32>,
    return
  }
}

</mosaic_0001>

<llo_original>
// kernel: densenet_forward.1
$region0: #{densenet_forward.1}
  #allocation0 [shape = 'u32[]', space=smem, size = 0x4, offset = 0x4, fixed_abs, tag = 'smem constant byte address 0x4 - core index']
  #allocation1 [shape = 'u32[144,128]{1,0:T(1,128)}', space=vmem, size = 0x12000, scoped, tag = 'internal scratch']
  #allocation2 [shape = 'f32[200,128]{1,0:T(8,128)}', space=vmem, size = 0x19000, scoped, tag = 'scratch operand']
  #allocation3 [shape = 'f32[8,512]{1,0:T(8,128)}', space=vmem, size = 0x4000, scoped, tag = 'scratch operand']
  %s0 = inlined_call_operand.vmem [shape: f32[8,128], index: 0, kind: input, shape index: {}]
  %s1 = inlined_call_operand.vmem [shape: f32[32,24], index: 1, kind: input, shape index: {}]
  %s2 = inlined_call_operand.vmem [shape: f32[32,200], index: 2, kind: input, shape index: {}]
  %s3 = inlined_call_operand.vmem [shape: f32[32,72], index: 3, kind: input, shape index: {}]
  %s4 = inlined_call_operand.vmem [shape: f32[32,1], index: 4, kind: input, shape index: {}]
  %s5 = inlined_call_operand.hbm [shape: f32[512,128], index: 5, kind: input, shape index: {}]
  %s6 = inlined_call_operand.vmem [shape: f32[1,128], index: 6, kind: input, shape index: {}]
  %s7 = inlined_call_operand.vmem [shape: f32[72,128], index: 7, kind: output, shape index: {0}]
  %s8 = inlined_call_operand.vmem [shape: f32[8,128], index: 8, kind: output, shape index: {1}]
  %9 = xla_tuple %s7, %s8
  %s10 = sld [smem:[#allocation0]]
  $region50: #{densenet_forward.1} parent=0
    _
  %s12 = ssub.s32 1, %s10
  %s13 = scalar_select 0, %s12, %s10
  $region1: #{densenet_forward.1} parent=0
    #allocation4 [shape = 'u8[262144]{0}', space=vmem, size = 0x40000, scoped, tag = 'input window, operand 5, single buffered']
    #allocation5 [shape = 's32[1]{0}', space=sflag, size = 0x4, scoped, tag = 'scoped memory for densenet_forward.1']
    %14 = vsyncpa [#allocation5], 0
    // Predicated region
    $region2: #{densenet_forward.1} parent=1 // pred_check
      _
    $region3: #{densenet_forward.1} parent=1 // pred_check_branch
      %16 = sbr.rel (0) target = $region5
    $region4: #{densenet_forward.1} parent=1 // pred_region
      _
    $region5: #{densenet_forward.1} parent=1 // pred_fallthru
      _
    // Predicated region
    $region6: #{densenet_forward.1} parent=1 // pred_check
      _
    $region7: #{densenet_forward.1} parent=1 // pred_check_branch
      %18 = sbr.rel (0) target = $region9
    $region8: #{densenet_forward.1} parent=1 // pred_region
      _
    $region9: #{densenet_forward.1} parent=1 // pred_fallthru
      _
    // Predicated region
    $region10: #{densenet_forward.1} parent=1 // pred_check
      _
    $region11: #{densenet_forward.1} parent=1 // pred_check_branch
      %20 = sbr.rel (0) target = $region13
    $region12: #{densenet_forward.1} parent=1 // pred_region
      _
    $region13: #{densenet_forward.1} parent=1 // pred_fallthru
      _
    // Predicated region
    $region14: #{densenet_forward.1} parent=1 // pred_check
      _
    $region15: #{densenet_forward.1} parent=1 // pred_check_branch
      %22 = sbr.rel (0) target = $region17
    $region16: #{densenet_forward.1} parent=1 // pred_region
      _
    $region17: #{densenet_forward.1} parent=1 // pred_fallthru
      _
    // Predicated region
    $region18: #{densenet_forward.1} parent=1 // pred_check
      _
    $region19: #{densenet_forward.1} parent=1 // pred_check_branch
      %24 = sbr.rel (0) target = $region21
    $region20: #{densenet_forward.1} parent=1 // pred_region
      _
    $region21: #{densenet_forward.1} parent=1 // pred_fallthru
      _
    // Predicated region
    $region22: #{densenet_forward.1} parent=1 // pred_check
      _
    $region23: #{densenet_forward.1} parent=1 // pred_check_branch
      %26 = sbr.rel (0) target = $region25
    $region24: #{densenet_forward.1} parent=1 // pred_region
      %s28 = ssub.s32 8192, 8192
      %29 = vsyncadd [#allocation5], %s28
      %s30 = sshll.u32 [#allocation4], 4
      %s31 = int_to_ptr.vmem [resolvable:$true] %s30
      %36 = dma.hbm_to_vmem [thread:$0]  %s5, 8192, %s31, [#allocation5], 128, 128, 8
    $region25: #{densenet_forward.1} parent=1 // pred_fallthru
      _
    // Predicated region
    $region26: #{densenet_forward.1} parent=1 // pred_check
      _
    $region27: #{densenet_forward.1} parent=1 // pred_check_branch
      %38 = sbr.rel (0) target = $region29
    $region28: #{densenet_forward.1} parent=1 // pred_region
      _
    $region29: #{densenet_forward.1} parent=1 // pred_fallthru
      _
    // Predicated region
    $region30: #{densenet_forward.1} parent=1 // pred_check
      _
    $region31: #{densenet_forward.1} parent=1 // pred_check_branch
      %40 = sbr.rel (0) target = $region33
    $region32: #{densenet_forward.1} parent=1 // pred_region
      %41 = dma.done [#allocation5], 8192
    $region33: #{densenet_forward.1} parent=1 // pred_fallthru
      _
    %v42 = vlaneseq
    %v43 = vand.u32 %v42, 127
    %v44 = vadd.s32 %v43, 4294967294
    %vm45 = vcmp.ge.s32.totalorder %v44, 0
    %vm46 = vcmp.lt.s32.totalorder %v44, 128
    %vm47 = vmand %vm45, %vm46
    %v48 = vsel %vm47, 1, 0
    %v49 = vcvt.s32.f32 %v48
    %v50 = vadd.s32 %v43, 4294967295
    %vm51 = vcmp.ge.s32.totalorder %v50, 0
    %vm52 = vcmp.lt.s32.totalorder %v50, 128
    %vm53 = vmand %vm51, %vm52
    %v54 = vsel %vm53, 1, 0
    %v55 = vcvt.s32.f32 %v54
    %v56 = vadd.s32 %v43, 1
    %vm57 = vcmp.ge.s32.totalorder %v56, 0
    %vm58 = vcmp.lt.s32.totalorder %v56, 128
    %vm59 = vmand %vm57, %vm58
    %v60 = vsel %vm59, 1, 0
    %v61 = vcvt.s32.f32 %v60
    %v62 = vadd.s32 %v43, 2
    %vm63 = vcmp.ge.s32.totalorder %v62, 0
    %vm64 = vcmp.lt.s32.totalorder %v62, 128
    %vm65 = vmand %vm63, %vm64
    %v66 = vsel %vm65, 1, 0
    %v67 = vcvt.s32.f32 %v66
    %v68 = vld [vmem:[%s0] sm:$0xff]
    %69 = vst [vmem:[%s7] sm:$0xff] %v68
    %v70 = vld [vmem:[%s7] sm:$0xff]
    %71 = vadd.xlane.f32.xlu0 %v70
    %v72 = vpop.xlane.xlu0 %71
    %v73 = vrcp.pop 128.0
    %v74 = vmul.f32 %v72, %v73
    %v75 = vsub.f32 %v70, %v74
    %v76 = vmul.f32 %v75, %v75
    %77 = vadd.xlane.f32.xlu0 %v76
    %v78 = vpop.xlane.xlu0 %77
    %v79 = vmul.f32 %v78, %v73
    %v80 = vadd.f32 %v79, 1e-05
    %v81 = vrsqrt.pop %v80
    %v82 = vmul.f32 %v75, %v81
    %v83 = vmax.f32 %v82, 0.0
    %84 = vrot.lane.b32.xlu0 %v83, 1
    %v85 = vpop.permute.xlu0 %84
    %v86 = vmul.f32 %v85, %v55
    %87 = vst [vmem:[#allocation2] sm:$0xff] %v86
    %88 = vst [vmem:[#allocation2 + $0x8] sm:$0xff] %v83
    %89 = vrot.lane.b32.xlu0 %v83, 127
    %v90 = vpop.permute.xlu0 %89
    %v91 = vmul.f32 %v90, %v61
    %92 = vst [vmem:[#allocation2 + $0x10] sm:$0xff] %v91
    %v93 = vld [vmem:[%s1] sm:$0xff]
    %v94 = vld [vmem:[%s1 + $0x8] sm:$0xff]
    %v95 = vld [vmem:[%s1 + $0x10] sm:$0xff]
    %v96 = vld [vmem:[%s1 + $0x18] sm:$0xff]
    %v97 = vld [vmem:[#allocation2] sm:$0xff]
    %v98 = vld [vmem:[#allocation2 + $0x8] sm:$0xff]
    %v99 = vld [vmem:[#allocation2 + $0x10] sm:$0xff]
    %vm100 = vcmask 195584
    %v102 = vsel %vm100, %v93, 0
    %v105 = vsel %vm100, %v94, 0
    %v108 = vsel %vm100, %v95, 0
    %v111 = vsel %vm100, %v96, 0
    %113 = vmatprep.subr.mxu0 0.0
    %114 = vmatpush1.msra.mxu0 %v97
    %115 = vmatprep.subr.mxu0 0.0
    %116 = vmatpush1.msra.mxu0 %v98
    %117 = vmatprep.subr.mxu0 0.0
    %118 = vmatpush1.msra.mxu0 %v99
    %119 = vmatprep.subr.mxu0 0.0
    %120 = vmatpush1.msra.mxu0 0.0
    %121 = vmatprep.subr.mxu0 0.0
    %122 = vmatpush1.msra.mxu0 0.0
    %123 = vmatprep.subr.mxu0 0.0
    %124 = vmatpush1.msra.mxu0 0.0
    %125 = vmatprep.subr.mxu0 0.0
    %126 = vmatpush1.msra.mxu0 0.0
    %127 = vmatprep.subr.mxu0 0.0
    %128 = vmatpush1.msra.mxu0 0.0
    %129 = vmatprep.subr.mxu0 0.0
    %130 = vmatpush1.msra.mxu0 0.0
    %131 = vmatprep.subr.mxu0 0.0
    %132 = vmatpush1.msra.mxu0 0.0
    %133 = vmatprep.subr.mxu0 0.0
    %134 = vmatpush1.msra.mxu0 0.0
    %135 = vmatprep.subr.mxu0 0.0
    %136 = vmatpush1.msra.mxu0 0.0
    %137 = vmatprep.subr.mxu0 0.0
    %138 = vmatpush1.msra.mxu0 0.0
    %139 = vmatprep.subr.mxu0 0.0
    %140 = vmatpush1.msra.mxu0 0.0
    %141 = vmatprep.subr.mxu0 0.0
    %142 = vmatpush1.msra.mxu0 0.0
    %143 = vmatprep.subr.mxu0 0.0
    %144 = vmatpush1.msra.mxu0 0.0
    %145 = vmatprep.subr.mxu0 0.0
    %146 = vmatpush1.msra.mxu0 0.0
    %147 = vmatprep.subr.mxu0 0.0
    %148 = vmatpush1.msra.mxu0 0.0
    %149 = vmatprep.subr.mxu0 0.0
    %150 = vmatpush1.msra.mxu0 0.0
    %151 = vmatprep.subr.mxu0 0.0
    %152 = vmatpush1.msra.mxu0 0.0
    %153 = vmatprep.subr.mxu0 0.0
    %154 = vmatpush1.msra.mxu0 0.0
    %155 = vmatprep.subr.mxu0 0.0
    %156 = vmatpush1.msra.mxu0 0.0
    %157 = vmatprep.subr.mxu0 0.0
    %158 = vmatpush1.msra.mxu0 0.0
    %159 = vmatprep.subr.mxu0 0.0
    %160 = vmatpush1.msra.mxu0 0.0
    %161 = vmatprep.subr.mxu0 0.0
    %162 = vmatpush1.msra.mxu0 0.0
    %163 = vmatprep.subr.mxu0 0.0
    %164 = vmatpush1.msra.mxu0 0.0
    %165 = vmatprep.subr.mxu0 0.0
    %166 = vmatpush1.msra.mxu0 0.0
    %167 = vmatprep.subr.mxu0 0.0
    %168 = vmatpush1.msra.mxu0 0.0
    %169 = vmatprep.subr.mxu0 0.0
    %170 = vmatpush1.msra.mxu0 0.0
    %171 = vmatprep.subr.mxu0 0.0
    %172 = vmatpush1.msra.mxu0 0.0
    %173 = vmatprep.subr.mxu0 0.0
    %174 = vmatpush1.msra.mxu0 0.0
    %175 = vmatprep.subr.mxu0 0.0
    %176 = vmatpush1.msra.mxu0 0.0
    %177 = vmatprep.mubr.f32.mxu0 0.0
    %178 = vmatmul.mubr.f32.gmra.mrb[0].mxu0 %v102
    %v179 = vpop.f32.mrb[0].mxu0
    %v180 = vadd.f32 0.0, %v179
    %v181 = vpop.f32.mrb[0].mxu0
    %182 = vmatprep.mubr.f32.mxu0 0.0
    %183 = vmatmul.mubr.f32.gmra.mrb[0].mxu0 %v105
    %v184 = vpop.f32.mrb[0].mxu0
    %v185 = vadd.f32 0.0, %v184
    %v186 = vpop.f32.mrb[0].mxu0
    %187 = vmatprep.mubr.f32.mxu0 0.0
    %188 = vmatmul.mubr.f32.gmra.mrb[0].mxu0 %v108
    %v189 = vpop.f32.mrb[0].mxu0
    %v190 = vadd.f32 0.0, %v189
    %v191 = vpop.f32.mrb[0].mxu0
    %192 = vmatprep.mubr.f32.mxu0 0.0
    %193 = vmatmul.mubr.f32.gmra.mrb[0].mxu0 %v111
    %v194 = vpop.f32.mrb[0].mxu0
    %v195 = vadd.f32 0.0, %v194
    %v196 = vpop.f32.mrb[0].mxu0
    %197 = vdwg.mxu0
    %198 = vst [vmem:[%s7 + $0x8] sm:$0xff] %v180
    %199 = vst [vmem:[%s7 + $0x10] sm:$0xff] %v185
    %200 = vst [vmem:[%s7 + $0x18] sm:$0xff] %v190
    %201 = vst [vmem:[%s7 + $0x20] sm:$0xff] %v195
    %v202 = vld [vmem:[%s7] sm:$0xff]
    %v203 = vld [vmem:[%s7 + $0x8] sm:$0xff]
    %v204 = vld [vmem:[%s7 + $0x10] sm:$0xff]
    %v205 = vld [vmem:[%s7 + $0x18] sm:$0xff]
    %v206 = vld [vmem:[%s7 + $0x20] sm:$0xff]
    %207 = vadd.xlane.f32.xlu0 %v202
    %v208 = vpop.xlane.xlu0 %207
    %209 = vadd.xlane.f32.xlu0 %v203
    %v210 = vpop.xlane.xlu0 %209
    %211 = vadd.xlane.f32.xlu0 %v204
    %v212 = vpop.xlane.xlu0 %211
    %213 = vadd.xlane.f32.xlu0 %v205
    %v214 = vpop.xlane.xlu0 %213
    %215 = vadd.xlane.f32.xlu0 %v206
    %v216 = vpop.xlane.xlu0 %215
    %v217 = vmul.f32 %v208, %v73
    %v218 = vmul.f32 %v210, %v73
    %v219 = vmul.f32 %v212, %v73
    %v220 = vmul.f32 %v214, %v73
    %v221 = vmul.f32 %v216, %v73
    %v222 = vsub.f32 %v202, %v217
    %v223 = vsub.f32 %v203, %v218
    %v224 = vsub.f32 %v204, %v219
    %v225 = vsub.f32 %v205, %v220
    %v226 = vsub.f32 %v206, %v221
    %v227 = vmul.f32 %v222, %v222
    %v228 = vmul.f32 %v223, %v223
    %v229 = vmul.f32 %v224, %v224
    %v230 = vmul.f32 %v225, %v225
    %v231 = vmul.f32 %v226, %v226
    %232 = vadd.xlane.f32.xlu0 %v227
    %v233 = vpop.xlane.xlu0 %232
    %234 = vadd.xlane.f32.xlu0 %v228
    %v235 = vpop.xlane.xlu0 %234
    %236 = vadd.xlane.f32.xlu0 %v229
    %v237 = vpop.xlane.xlu0 %236
    %238 = vadd.xlane.f32.xlu0 %v230
    %v239 = vpop.xlane.xlu0 %238
    %240 = vadd.xlane.f32.xlu0 %v231
    %v241 = vpop.xlane.xlu0 %240
    %v242 = vmul.f32 %v233, %v73
    %v243 = vmul.f32 %v235, %v73
    %v244 = vmul.f32 %v237, %v73
    %v245 = vmul.f32 %v239, %v73
    %v246 = vmul.f32 %v241, %v73
    %v247 = vadd.f32 %v242, 1e-05
    %v248 = vadd.f32 %v243, 1e-05
    %v249 = vadd.f32 %v244, 1e-05
    %v250 = vadd.f32 %v245, 1e-05
    %v251 = vadd.f32 %v246, 1e-05
    %v252 = vrsqrt.pop %v247
    %v253 = vrsqrt.pop %v248
    %v254 = vrsqrt.pop %v249
    %v255 = vrsqrt.pop %v250
    %v256 = vrsqrt.pop %v251
    %v257 = vmul.f32 %v222, %v252
    %v258 = vmul.f32 %v223, %v253
    %v259 = vmul.f32 %v224, %v254
    %v260 = vmul.f32 %v225, %v255
    %v261 = vmul.f32 %v226, %v256
    %v262 = vmax.f32 %v257, 0.0
    %v263 = vmax.f32 %v258, 0.0
    %v264 = vmax.f32 %v259, 0.0
    %v265 = vmax.f32 %v260, 0.0
    %v266 = vmax.f32 %v261, 0.0
    %267 = vrot.lane.b32.xlu0 %v262, 2
    %v268 = vpop.permute.xlu0 %267
    %269 = vrot.lane.b32.xlu0 %v263, 2
    %v270 = vpop.permute.xlu0 %269
    %271 = vrot.lane.b32.xlu0 %v264, 2
    %v272 = vpop.permute.xlu0 %271
    %273 = vrot.lane.b32.xlu0 %v265, 2
    %v274 = vpop.permute.xlu0 %273
    %275 = vrot.lane.b32.xlu0 %v266, 2
    %v276 = vpop.permute.xlu0 %275
    %v277 = vmul.f32 %v268, %v49
    %v278 = vmul.f32 %v270, %v49
    %v279 = vmul.f32 %v272, %v49
    %v280 = vmul.f32 %v274, %v49
    %v281 = vmul.f32 %v276, %v49
    %282 = vst [vmem:[#allocation2] sm:$0xff] %v277
    %283 = vst [vmem:[#allocation2 + $0x8] sm:$0xff] %v278
    %284 = vst [vmem:[#allocation2 + $0x10] sm:$0xff] %v279
    %285 = vst [vmem:[#allocation2 + $0x18] sm:$0xff] %v280
    %286 = vst [vmem:[#allocation2 + $0x20] sm:$0xff] %v281
    %287 = vrot.lane.b32.xlu0 %v262, 1
    %v288 = vpop.permute.xlu0 %287
    %289 = vrot.lane.b32.xlu0 %v263, 1
    %v290 = vpop.permute.xlu0 %289
    %291 = vrot.lane.b32.xlu0 %v264, 1
    %v292 = vpop.permute.xlu0 %291
    %293 = vrot.lane.b32.xlu0 %v265, 1
    %v294 = vpop.permute.xlu0 %293
    %295 = vrot.lane.b32.xlu0 %v266, 1
    %v296 = vpop.permute.xlu0 %295
    %v297 = vmul.f32 %v288, %v55
    %v298 = vmul.f32 %v290, %v55
    %v299 = vmul.f32 %v292, %v55
    %v300 = vmul.f32 %v294, %v55
    %v301 = vmul.f32 %v296, %v55
    %302 = vst [vmem:[#allocation2 + $0x28] sm:$0xff] %v297
    %303 = vst [vmem:[#allocation2 + $0x30] sm:$0xff] %v298
    %304 = vst [vmem:[#allocation2 + $0x38] sm:$0xff] %v299
    %305 = vst [vmem:[#allocation2 + $0x40] sm:$0xff] %v300
    %306 = vst [vmem:[#allocation2 + $0x48] sm:$0xff] %v301
    %307 = vst [vmem:[#allocation2 + $0x50] sm:$0xff] %v262
    %308 = vst [vmem:[#allocation2 + $0x58] sm:$0xff] %v263
    %309 = vst [vmem:[#allocation2 + $0x60] sm:$0xff] %v264
    %310 = vst [vmem:[#allocation2 + $0x68] sm:$0xff] %v265
    %311 = vst [vmem:[#allocation2 + $0x70] sm:$0xff] %v266
    %312 = vrot.lane.b32.xlu0 %v262, 127
    %v313 = vpop.permute.xlu0 %312
    %314 = vrot.lane.b32.xlu0 %v263, 127
    %v315 = vpop.permute.xlu0 %314
    %316 = vrot.lane.b32.xlu0 %v264, 127
    %v317 = vpop.permute.xlu0 %316
    %318 = vrot.lane.b32.xlu0 %v265, 127
    %v319 = vpop.permute.xlu0 %318
    %320 = vrot.lane.b32.xlu0 %v266, 127
    %v321 = vpop.permute.xlu0 %320
    %v322 = vmul.f32 %v313, %v61
    %v323 = vmul.f32 %v315, %v61
    %v324 = vmul.f32 %v317, %v61
    %v325 = vmul.f32 %v319, %v61
    %v326 = vmul.f32 %v321, %v61
    %327 = vst [vmem:[#allocation2 + $0x78] sm:$0xff] %v322
    %328 = vst [vmem:[#allocation2 + $0x80] sm:$0xff] %v323
    %329 = vst [vmem:[#allocation2 + $0x88] sm:$0xff] %v324
    %330 = vst [vmem:[#allocation2 + $0x90] sm:$0xff] %v325
    %331 = vst [vmem:[#allocation2 + $0x98] sm:$0xff] %v326
    %332 = vrot.lane.b32.xlu0 %v262, 126
    %v333 = vpop.permute.xlu0 %332
    %334 = vrot.lane.b32.xlu0 %v263, 126
    %v335 = vpop.permute.xlu0 %334
    %336 = vrot.lane.b32.xlu0 %v264, 126
    %v337 = vpop.permute.xlu0 %336
    %338 = vrot.lane.b32.xlu0 %v265, 126
    %v339 = vpop.permute.xlu0 %338
    %340 = vrot.lane.b32.xlu0 %v266, 126
    %v341 = vpop.permute.xlu0 %340
    %v342 = vmul.f32 %v333, %v67
    %v343 = vmul.f32 %v335, %v67
    %v344 = vmul.f32 %v337, %v67
    %v345 = vmul.f32 %v339, %v67
    %v346 = vmul.f32 %v341, %v67
    %347 = vst [vmem:[#allocation2 + $0xa0] sm:$0xff] %v342
    %348 = vst [vmem:[#allocation2 + $0xa8] sm:$0xff] %v343
    %349 = vst [vmem:[#allocation2 + $0xb0] sm:$0xff] %v344
    %350 = vst [vmem:[#allocation2 + $0xb8] sm:$0xff] %v345
    %351 = vst [vmem:[#allocation2 + $0xc0] sm:$0xff] %v346
    %v352 = vld [vmem:[%s2] sm:$0xff]
    %v353 = vld [vmem:[%s2 + $0x8] sm:$0xff]
    %v354 = vld [vmem:[%s2 + $0x10] sm:$0xff]
    %v355 = vld [vmem:[%s2 + $0x18] sm:$0xff]
    %v356 = vld [vmem:[%s2 + $0x20] sm:$0xff]
    %v357 = vld [vmem:[%s2 + $0x28] sm:$0xff]
    %v358 = vld [vmem:[%s2 + $0x30] sm:$0xff]
    %v359 = vld [vmem:[%s2 + $0x38] sm:$0xff]
    %v360 = vld [vmem:[#allocation2] sm:$0xff]
    %v361 = vld [vmem:[#allocation2 + $0x8] sm:$0xff]
    %v362 = vld [vmem:[#allocation2 + $0x10] sm:$0xff]
    %v363 = vld [vmem:[#allocation2 + $0x18] sm:$0xff]
    %v364 = vld [vmem:[#allocation2 + $0x20] sm:$0xff]
    %v365 = vld [vmem:[#allocation2 + $0x28] sm:$0xff]
    %v366 = vld [vmem:[#allocation2 + $0x30] sm:$0xff]
    %v367 = vld [vmem:[#allocation2 + $0x38] sm:$0xff]
    %v368 = vld [vmem:[#allocation2 + $0x40] sm:$0xff]
    %v369 = vld [vmem:[#allocation2 + $0x48] sm:$0xff]
    %v370 = vld [vmem:[#allocation2 + $0x50] sm:$0xff]
    %v371 = vld [vmem:[#allocation2 + $0x58] sm:$0xff]
    %v372 = vld [vmem:[#allocation2 + $0x60] sm:$0xff]
    %v373 = vld [vmem:[#allocation2 + $0x68] sm:$0xff]
    %v374 = vld [vmem:[#allocation2 + $0x70] sm:$0xff]
    %v375 = vld [vmem:[#allocation2 + $0x78] sm:$0xff]
    %v376 = vld [vmem:[#allocation2 + $0x80] sm:$0xff]
    %v377 = vld [vmem:[#allocation2 + $0x88] sm:$0xff]
    %v378 = vld [vmem:[#allocation2 + $0x90] sm:$0xff]
    %v379 = vld [vmem:[#allocation2 + $0x98] sm:$0xff]
    %v380 = vld [vmem:[#allocation2 + $0xa0] sm:$0xff]
    %v381 = vld [vmem:[#allocation2 + $0xa8] sm:$0xff]
    %v382 = vld [vmem:[#allocation2 + $0xb0] sm:$0xff]
    %v383 = vld [vmem:[#allocation2 + $0xb8] sm:$0xff]
    %v384 = vld [vmem:[#allocation2 + $0xc0] sm:$0xff]
    %vm385 = vcmask 588800
    %v387 = vsel %vm385, %v353, 0
    %v390 = vsel %vm385, %v355, 0
    %v393 = vsel %vm385, %v357, 0
    %v396 = vsel %vm385, %v359, 0
    %398 = vmatprep.subr.mxu0 0.0
    %399 = vmatpush1.msra.mxu0 %v360
    %400 = vmatprep.subr.mxu0 0.0
    %401 = vmatpush1.msra.mxu0 %v361
    %402 = vmatprep.subr.mxu0 0.0
    %403 = vmatpush1.msra.mxu0 %v362
    %404 = vmatprep.subr.mxu0 0.0
    %405 = vmatpush1.msra.mxu0 %v363
    %406 = vmatprep.subr.mxu0 0.0
    %407 = vmatpush1.msra.mxu0 %v364
    %408 = vmatprep.subr.mxu0 0.0
    %409 = vmatpush1.msra.mxu0 %v365
    %410 = vmatprep.subr.mxu0 0.0
    %411 = vmatpush1.msra.mxu0 %v366
    %412 = vmatprep.subr.mxu0 0.0
    %413 = vmatpush1.msra.mxu0 %v367
    %414 = vmatprep.subr.mxu0 0.0
    %415 = vmatpush1.msra.mxu0 %v368
    %416 = vmatprep.subr.mxu0 0.0
    %417 = vmatpush1.msra.mxu0 %v369
    %418 = vmatprep.subr.mxu0 0.0
    %419 = vmatpush1.msra.mxu0 %v370
    %420 = vmatprep.subr.mxu0 0.0
    %421 = vmatpush1.msra.mxu0 %v371
    %422 = vmatprep.subr.mxu0 0.0
    %423 = vmatpush1.msra.mxu0 %v372
    %424 = vmatprep.subr.mxu0 0.0
    %425 = vmatpush1.msra.mxu0 %v373
    %426 = vmatprep.subr.mxu0 0.0
    %427 = vmatpush1.msra.mxu0 %v374
    %428 = vmatprep.subr.mxu0 0.0
    %429 = vmatpush1.msra.mxu0 %v375
    %430 = vmatprep.subr.mxu0 0.0
    %431 = vmatpush1.msra.mxu0 %v376
    %432 = vmatprep.subr.mxu0 0.0
    %433 = vmatpush1.msra.mxu0 %v377
    %434 = vmatprep.subr.mxu0 0.0
    %435 = vmatpush1.msra.mxu0 %v378
    %436 = vmatprep.subr.mxu0 0.0
    %437 = vmatpush1.msra.mxu0 %v379
    %438 = vmatprep.subr.mxu0 0.0
    %439 = vmatpush1.msra.mxu0 %v380
    %440 = vmatprep.subr.mxu0 0.0
    %441 = vmatpush1.msra.mxu0 %v381
    %442 = vmatprep.subr.mxu0 0.0
    %443 = vmatpush1.msra.mxu0 %v382
    %444 = vmatprep.subr.mxu0 0.0
    %445 = vmatpush1.msra.mxu0 %v383
    %446 = vmatprep.subr.mxu0 0.0
    %447 = vmatpush1.msra.mxu0 %v384
    %448 = vmatprep.subr.mxu0 0.0
    %449 = vmatpush1.msra.mxu0 0.0
    %450 = vmatprep.subr.mxu0 0.0
    %451 = vmatpush1.msra.mxu0 0.0
    %452 = vmatprep.subr.mxu0 0.0
    %453 = vmatpush1.msra.mxu0 0.0
    %454 = vmatprep.subr.mxu0 0.0
    %455 = vmatpush1.msra.mxu0 0.0
    %456 = vmatprep.subr.mxu0 0.0
    %457 = vmatpush1.msra.mxu0 0.0
    %458 = vmatprep.subr.mxu0 0.0
    %459 = vmatpush1.msra.mxu0 0.0
    %460 = vmatprep.subr.mxu0 0.0
    %461 = vmatpush1.msra.mxu0 0.0
    %462 = vmatprep.mubr.f32.mxu0 %v387
    %463 = vmatmul.mubr.f32.gmra.mrb[0].mxu0 %v352
    %v464 = vpop.f32.mrb[0].mxu0
    %v465 = vadd.f32 0.0, %v464
    %v466 = vpop.f32.mrb[0].mxu0
    %467 = vmatprep.mubr.f32.mxu0 %v390
    %468 = vmatmul.mubr.f32.gmra.mrb[0].mxu0 %v354
    %v469 = vpop.f32.mrb[0].mxu0
    %v470 = vadd.f32 0.0, %v469
    %v471 = vpop.f32.mrb[0].mxu0
    %472 = vmatprep.mubr.f32.mxu0 %v393
    %473 = vmatmul.mubr.f32.gmra.mrb[0].mxu0 %v356
    %v474 = vpop.f32.mrb[0].mxu0
    %v475 = vadd.f32 0.0, %v474
    %v476 = vpop.f32.mrb[0].mxu0
    %477 = vmatprep.mubr.f32.mxu0 %v396
    %478 = vmatmul.mubr.f32.gmra.mrb[0].mxu0 %v358
    %v479 = vpop.f32.mrb[0].mxu0
    %v480 = vadd.f32 0.0, %v479
    %v481 = vpop.f32.mrb[0].mxu0
    %482 = vdwg.mxu0
    %483 = vst [vmem:[%s7 + $0x28] sm:$0xff] %v465
    %484 = vst [vmem:[%s7 + $0x30] sm:$0xff] %v470
    %485 = vst [vmem:[%s7 + $0x38] sm:$0xff] %v475
    %486 = vst [vmem:[%s7 + $0x40] sm:$0xff] %v480
    %v487 = vld [vmem:[%s3] sm:$0xff]
    %v488 = vld [vmem:[%s3 + $0x8] sm:$0xff]
    %v489 = vld [vmem:[%s3 + $0x10] sm:$0xff]
    %v490 = vld [vmem:[%s3 + $0x18] sm:$0xff]
    %v491 = vld [vmem:[%s7] sm:$0xff]
    %v492 = vld [vmem:[%s7 + $0x8] sm:$0xff]
    %v493 = vld [vmem:[%s7 + $0x10] sm:$0xff]
    %v494 = vld [vmem:[%s7 + $0x18] sm:$0xff]
    %v495 = vld [vmem:[%s7 + $0x20] sm:$0xff]
    %v496 = vld [vmem:[%s7 + $0x28] sm:$0xff]
    %v497 = vld [vmem:[%s7 + $0x30] sm:$0xff]
    %v498 = vld [vmem:[%s7 + $0x38] sm:$0xff]
    %v499 = vld [vmem:[%s7 + $0x40] sm:$0xff]
    %v500 = vld [vmem:[%s4] sm:$0xff]
    %v501 = vld [vmem:[%s4 + $0x8] sm:$0xff]
    %v502 = vld [vmem:[%s4 + $0x10] sm:$0xff]
    %v503 = vld [vmem:[%s4 + $0x18] sm:$0xff]
    %505 = vset.pattern.permute.xlu0 0
    %506 = vperm.xlu0 %505, %v500
    %v507 = vpop.permute.xlu0 %506
    %510 = vset.pattern.permute.xlu0 0
    %511 = vperm.xlu0 %510, %v501
    %v512 = vpop.permute.xlu0 %511
    %515 = vset.pattern.permute.xlu0 0
    %516 = vperm.xlu0 %515, %v502
    %v517 = vpop.permute.xlu0 %516
    %520 = vset.pattern.permute.xlu0 0
    %521 = vperm.xlu0 %520, %v503
    %v522 = vpop.permute.xlu0 %521
    %v525 = vsel %vm385, %v487, 0
    %v528 = vsel %vm385, %v488, 0
    %v531 = vsel %vm385, %v489, 0
    %v534 = vsel %vm385, %v490, 0
    %536 = vmatprep.subr.mxu0 0.0
    %537 = vmatpush1.msra.mxu0 %v491
    %538 = vmatprep.subr.mxu0 0.0
    %539 = vmatpush1.msra.mxu0 %v492
    %540 = vmatprep.subr.mxu0 0.0
    %541 = vmatpush1.msra.mxu0 %v493
    %542 = vmatprep.subr.mxu0 0.0
    %543 = vmatpush1.msra.mxu0 %v494
    %544 = vmatprep.subr.mxu0 0.0
    %545 = vmatpush1.msra.mxu0 %v495
    %546 = vmatprep.subr.mxu0 0.0
    %547 = vmatpush1.msra.mxu0 %v496
    %548 = vmatprep.subr.mxu0 0.0
    %549 = vmatpush1.msra.mxu0 %v497
    %550 = vmatprep.subr.mxu0 0.0
    %551 = vmatpush1.msra.mxu0 %v498
    %552 = vmatprep.subr.mxu0 0.0
    %553 = vmatpush1.msra.mxu0 %v499
    %554 = vmatprep.subr.mxu0 0.0
    %555 = vmatpush1.msra.mxu0 0.0
    %556 = vmatprep.subr.mxu0 0.0
    %557 = vmatpush1.msra.mxu0 0.0
    %558 = vmatprep.subr.mxu0 0.0
    %559 = vmatpush1.msra.mxu0 0.0
    %560 = vmatprep.subr.mxu0 0.0
    %561 = vmatpush1.msra.mxu0 0.0
    %562 = vmatprep.subr.mxu0 0.0
    %563 = vmatpush1.msra.mxu0 0.0
    %564 = vmatprep.subr.mxu0 0.0
    %565 = vmatpush1.msra.mxu0 0.0
    %566 = vmatprep.subr.mxu0 0.0
    %567 = vmatpush1.msra.mxu0 0.0
    %568 = vmatprep.subr.mxu0 0.0
    %569 = vmatpush1.msra.mxu0 0.0
    %570 = vmatprep.subr.mxu0 0.0
    %571 = vmatpush1.msra.mxu0 0.0
    %572 = vmatprep.subr.mxu0 0.0
    %573 = vmatpush1.msra.mxu0 0.0
    %574 = vmatprep.subr.mxu0 0.0
    %575 = vmatpush1.msra.mxu0 0.0
    %576 = vmatprep.subr.mxu0 0.0
    %577 = vmatpush1.msra.mxu0 0.0
    %578 = vmatprep.subr.mxu0 0.0
    %579 = vmatpush1.msra.mxu0 0.0
    %580 = vmatprep.subr.mxu0 0.0
    %581 = vmatpush1.msra.mxu0 0.0
    %582 = vmatprep.subr.mxu0 0.0
    %583 = vmatpush1.msra.mxu0 0.0
    %584 = vmatprep.subr.mxu0 0.0
    %585 = vmatpush1.msra.mxu0 0.0
    %586 = vmatprep.subr.mxu0 0.0
    %587 = vmatpush1.msra.mxu0 0.0
    %588 = vmatprep.subr.mxu0 0.0
    %589 = vmatpush1.msra.mxu0 0.0
    %590 = vmatprep.subr.mxu0 0.0
    %591 = vmatpush1.msra.mxu0 0.0
    %592 = vmatprep.subr.mxu0 0.0
    %593 = vmatpush1.msra.mxu0 0.0
    %594 = vmatprep.subr.mxu0 0.0
    %595 = vmatpush1.msra.mxu0 0.0
    %596 = vmatprep.subr.mxu0 0.0
    %597 = vmatpush1.msra.mxu0 0.0
    %598 = vmatprep.subr.mxu0 0.0
    %599 = vmatpush1.msra.mxu0 0.0
    %600 = vmatprep.mubr.f32.mxu0 0.0
    %601 = vmatmul.mubr.f32.gmra.mrb[0].mxu0 %v525
    %v602 = vpop.f32.mrb[0].mxu0
    %v603 = vadd.f32 %v507, %v602
    %v604 = vpop.f32.mrb[0].mxu0
    %605 = vmatprep.mubr.f32.mxu0 0.0
    %606 = vmatmul.mubr.f32.gmra.mrb[0].mxu0 %v528
    %v607 = vpop.f32.mrb[0].mxu0
    %v608 = vadd.f32 %v512, %v607
    %v609 = vpop.f32.mrb[0].mxu0
    %610 = vmatprep.mubr.f32.mxu0 0.0
    %611 = vmatmul.mubr.f32.gmra.mrb[0].mxu0 %v531
    %v612 = vpop.f32.mrb[0].mxu0
    %v613 = vadd.f32 %v517, %v612
    %v614 = vpop.f32.mrb[0].mxu0
    %615 = vmatprep.mubr.f32.mxu0 0.0
    %616 = vmatmul.mubr.f32.gmra.mrb[0].mxu0 %v534
    %v617 = vpop.f32.mrb[0].mxu0
    %v618 = vadd.f32 %v522, %v617
    %v619 = vpop.f32.mrb[0].mxu0
    %620 = vdwg.mxu0
    %v621 = vmul.f32 %v603, 0.5
    %v622 = vmul.f32 %v608, 0.5
    %v623 = vmul.f32 %v613, 0.5
    %v624 = vmul.f32 %v618, 0.5
    %v625 = vmul.f32 %v603, 0.70710677
    %v626 = vmul.f32 %v608, 0.70710677
    %v627 = vmul.f32 %v613, 0.70710677
    %v628 = vmul.f32 %v618, 0.70710677
    %vm629 = vcmp.ge.f32.partialorder %v625, 0.0
    %vm630 = vcmp.ge.f32.partialorder %v626, 0.0
    %vm631 = vcmp.ge.f32.partialorder %v627, 0.0
    %vm632 = vcmp.ge.f32.partialorder %v628, 0.0
    %v633 = vsel %vm629, 1.0, -1.0
    %v634 = vsel %vm630, 1.0, -1.0
    %v635 = vsel %vm631, 1.0, -1.0
    %v636 = vsel %vm632, 1.0, -1.0
    %v637 = vand.u32 2147483647, %v625
    %v638 = vand.u32 2147483647, %v626
    %v639 = vand.u32 2147483647, %v627
    %v640 = vand.u32 2147483647, %v628
    %v641 = vmul.f32 %v637, 0.3275911
    %v642 = vmul.f32 %v638, 0.3275911
    %v643 = vmul.f32 %v639, 0.3275911
    %v644 = vmul.f32 %v640, 0.3275911
    %v645 = vadd.f32 %v641, 1.0
    %v646 = vadd.f32 %v642, 1.0
    %v647 = vadd.f32 %v643, 1.0
    %v648 = vadd.f32 %v644, 1.0
    %v649 = vrcp.pop %v645
    %v650 = vmul.f32 1.0, %v649
    %v651 = vrcp.pop %v646
    %v652 = vmul.f32 1.0, %v651
    %v653 = vrcp.pop %v647
    %v654 = vmul.f32 1.0, %v653
    %v655 = vrcp.pop %v648
    %v656 = vmul.f32 1.0, %v655
    %v657 = vmul.f32 %v650, 1.0614054
    %v658 = vmul.f32 %v652, 1.0614054
    %v659 = vmul.f32 %v654, 1.0614054
    %v660 = vmul.f32 %v656, 1.0614054
    %v661 = vadd.f32 %v657, -1.4531521
    %v662 = vadd.f32 %v658, -1.4531521
    %v663 = vadd.f32 %v659, -1.4531521
    %v664 = vadd.f32 %v660, -1.4531521
    %v665 = vmul.f32 %v661, %v650
    %v666 = vmul.f32 %v662, %v652
    %v667 = vmul.f32 %v663, %v654
    %v668 = vmul.f32 %v664, %v656
    %v669 = vadd.f32 %v665, 1.4214138
    %v670 = vadd.f32 %v666, 1.4214138
    %v671 = vadd.f32 %v667, 1.4214138
    %v672 = vadd.f32 %v668, 1.4214138
    %v673 = vmul.f32 %v669, %v650
    %v674 = vmul.f32 %v670, %v652
    %v675 = vmul.f32 %v671, %v654
    %v676 = vmul.f32 %v672, %v656
    %v677 = vadd.f32 %v673, -0.28449672
    %v678 = vadd.f32 %v674, -0.28449672
    %v679 = vadd.f32 %v675, -0.28449672
    %v680 = vadd.f32 %v676, -0.28449672
    %v681 = vmul.f32 %v677, %v650
    %v682 = vmul.f32 %v678, %v652
    %v683 = vmul.f32 %v679, %v654
    %v684 = vmul.f32 %v680, %v656
    %v685 = vadd.f32 %v681, 0.2548296
    %v686 = vadd.f32 %v682, 0.2548296
    %v687 = vadd.f32 %v683, 0.2548296
    %v688 = vadd.f32 %v684, 0.2548296
    %v689 = vmul.f32 %v685, %v650
    %v690 = vmul.f32 %v686, %v652
    %v691 = vmul.f32 %v687, %v654
    %v692 = vmul.f32 %v688, %v656
    %v693 = vsub.f32 0.0, %v637
    %v694 = vsub.f32 0.0, %v638
    %v695 = vsub.f32 0.0, %v639
    %v696 = vsub.f32 0.0, %v640
    %v697 = vmul.f32 %v693, %v637
    %v698 = vmul.f32 %v694, %v638
    %v699 = vmul.f32 %v695, %v639
    %v700 = vmul.f32 %v696, %v640
    %v701 = vmul.f32 %v697, 1.442695
    %v702 = vpow.pop %v701
    %v703 = vmul.f32 %v698, 1.442695
    %v704 = vpow.pop %v703
    %v705 = vmul.f32 %v699, 1.442695
    %v706 = vpow.pop %v705
    %v707 = vmul.f32 %v700, 1.442695
    %v708 = vpow.pop %v707
    %v709 = vmul.f32 %v689, %v702
    %v710 = vmul.f32 %v690, %v704
    %v711 = vmul.f32 %v691, %v706
    %v712 = vmul.f32 %v692, %v708
    %v713 = vsub.f32 1.0, %v709
    %v714 = vsub.f32 1.0, %v710
    %v715 = vsub.f32 1.0, %v711
    %v716 = vsub.f32 1.0, %v712
    %v717 = vmul.f32 %v633, %v713
    %v718 = vmul.f32 %v634, %v714
    %v719 = vmul.f32 %v635, %v715
    %v720 = vmul.f32 %v636, %v716
    %v721 = vadd.f32 %v717, 1.0
    %v722 = vadd.f32 %v718, 1.0
    %v723 = vadd.f32 %v719, 1.0
    %v724 = vadd.f32 %v720, 1.0
    %v725 = vmul.f32 %v621, %v721
    %v726 = vmul.f32 %v622, %v722
    %v727 = vmul.f32 %v623, %v723
    %v728 = vmul.f32 %v624, %v724
    %729 = vst [vmem:[#allocation3] sm:$0xff] %v725
    %730 = vst [vmem:[#allocation3 + $0x8] sm:$0xff] %v726
    %731 = vst [vmem:[#allocation3 + $0x10] sm:$0xff] %v727
    %732 = vst [vmem:[#allocation3 + $0x18] sm:$0xff] %v728
    %v733 = vld [vmem:[#allocation3] sm:$0xff]
    %v734 = vld [vmem:[#allocation3 + $0x8] sm:$0xff]
    %v735 = vld [vmem:[#allocation3 + $0x10] sm:$0xff]
    %v736 = vld [vmem:[#allocation3 + $0x18] sm:$0xff]
    %v737 = vld [vmem:[#allocation4] sm:$0xff]
    %v738 = vld [vmem:[#allocation4 + $0x8] sm:$0xff]
    %v739 = vld [vmem:[#allocation4 + $0x10] sm:$0xff]
    %v740 = vld [vmem:[#allocation4 + $0x18] sm:$0xff]
    %v741 = vld [vmem:[#allocation4 + $0x20] sm:$0xff]
    %v742 = vld [vmem:[#allocation4 + $0x28] sm:$0xff]
    %v743 = vld [vmem:[#allocation4 + $0x30] sm:$0xff]
    %v744 = vld [vmem:[#allocation4 + $0x38] sm:$0xff]
    %v745 = vld [vmem:[#allocation4 + $0x40] sm:$0xff]
    %v746 = vld [vmem:[#allocation4 + $0x48] sm:$0xff]
    %v747 = vld [vmem:[#allocation4 + $0x50] sm:$0xff]
    %v748 = vld [vmem:[#allocation4 + $0x58] sm:$0xff]
    %v749 = vld [vmem:[#allocation4 + $0x60] sm:$0xff]
    %v750 = vld [vmem:[#allocation4 + $0x68] sm:$0xff]
    %v751 = vld [vmem:[#allocation4 + $0x70] sm:$0xff]
    %v752 = vld [vmem:[#allocation4 + $0x78] sm:$0xff]
    %v753 = vld [vmem:[#allocation4 + $0x80] sm:$0xff]
    %v754 = vld [vmem:[#allocation4 + $0x88] sm:$0xff]
    %v755 = vld [vmem:[#allocation4 + $0x90] sm:$0xff]
    %v756 = vld [vmem:[#allocation4 + $0x98] sm:$0xff]
    %v757 = vld [vmem:[#allocation4 + $0xa0] sm:$0xff]
    %v758 = vld [vmem:[#allocation4 + $0xa8] sm:$0xff]
    %v759 = vld [vmem:[#allocation4 + $0xb0] sm:$0xff]
    %v760 = vld [vmem:[#allocation4 + $0xb8] sm:$0xff]
    %v761 = vld [vmem:[#allocation4 + $0xc0] sm:$0xff]
    %v762 = vld [vmem:[#allocation4 + $0xc8] sm:$0xff]
    %v763 = vld [vmem:[#allocation4 + $0xd0] sm:$0xff]
    %v764 = vld [vmem:[#allocation4 + $0xd8] sm:$0xff]
    %v765 = vld [vmem:[#allocation4 + $0xe0] sm:$0xff]
    %v766 = vld [vmem:[#allocation4 + $0xe8] sm:$0xff]
    %v767 = vld [vmem:[#allocation4 + $0xf0] sm:$0xff]
    %v768 = vld [vmem:[#allocation4 + $0xf8] sm:$0xff]
    %v769 = vld [vmem:[#allocation4 + $0x100] sm:$0xff]
    %v770 = vld [vmem:[#allocation4 + $0x108] sm:$0xff]
    %v771 = vld [vmem:[#allocation4 + $0x110] sm:$0xff]
    %v772 = vld [vmem:[#allocation4 + $0x118] sm:$0xff]
    %v773 = vld [vmem:[#allocation4 + $0x120] sm:$0xff]
    %v774 = vld [vmem:[#allocation4 + $0x128] sm:$0xff]
    %v775 = vld [vmem:[#allocation4 + $0x130] sm:$0xff]
    %v776 = vld [vmem:[#allocation4 + $0x138] sm:$0xff]
    %v777 = vld [vmem:[#allocation4 + $0x140] sm:$0xff]
    %v778 = vld [vmem:[#allocation4 + $0x148] sm:$0xff]
    %v779 = vld [vmem:[#allocation4 + $0x150] sm:$0xff]
    %v780 = vld [vmem:[#allocation4 + $0x158] sm:$0xff]
    %v781 = vld [vmem:[#allocation4 + $0x160] sm:$0xff]
    %v782 = vld [vmem:[#allocation4 + $0x168] sm:$0xff]
    %v783 = vld [vmem:[#allocation4 + $0x170] sm:$0xff]
    %v784 = vld [vmem:[#allocation4 + $0x178] sm:$0xff]
    %v785 = vld [vmem:[#allocation4 + $0x180] sm:$0xff]
    %v786 = vld [vmem:[#allocation4 + $0x188] sm:$0xff]
    %v787 = vld [vmem:[#allocation4 + $0x190] sm:$0xff]
    %v788 = vld [vmem:[#allocation4 + $0x198] sm:$0xff]
    %v789 = vld [vmem:[#allocation4 + $0x1a0] sm:$0xff]
    %v790 = vld [vmem:[#allocation4 + $0x1a8] sm:$0xff]
    %v791 = vld [vmem:[#allocation4 + $0x1b0] sm:$0xff]
    %v792 = vld [vmem:[#allocation4 + $0x1b8] sm:$0xff]
    %v793 = vld [vmem:[#allocation4 + $0x1c0] sm:$0xff]
    %v794 = vld [vmem:[#allocation4 + $0x1c8] sm:$0xff]
    %v795 = vld [vmem:[#allocation4 + $0x1d0] sm:$0xff]
    %v796 = vld [vmem:[#allocation4 + $0x1d8] sm:$0xff]
    %v797 = vld [vmem:[#allocation4 + $0x1e0] sm:$0xff]
    %v798 = vld [vmem:[#allocation4 + $0x1e8] sm:$0xff]
    %v799 = vld [vmem:[#allocation4 + $0x1f0] sm:$0xff]
    %v800 = vld [vmem:[#allocation4 + $0x1f8] sm:$0xff]
    %v801 = vld [vmem:[%s6] sm:$0x1]
    %v803 = vlaneseq
    %v804 = vshrl.u32 %v803, 7
    %v805 = vsub.s32 0, %v804
    %v806 = vrot.slane %v801, %v805
    %808 = vmatprep.subr.mxu0 0.0
    %809 = vmatpush1.msra.mxu0 %v737
    %810 = vmatprep.subr.mxu0 0.0
    %811 = vmatpush1.msra.mxu0 %v738
    %812 = vmatprep.subr.mxu0 0.0
    %813 = vmatpush1.msra.mxu0 %v739
    %814 = vmatprep.subr.mxu0 0.0
    %815 = vmatpush1.msra.mxu0 %v740
    %816 = vmatprep.subr.mxu0 0.0
    %817 = vmatpush1.msra.mxu0 %v741
    %818 = vmatprep.subr.mxu0 0.0
    %819 = vmatpush1.msra.mxu0 %v742
    %820 = vmatprep.subr.mxu0 0.0
    %821 = vmatpush1.msra.mxu0 %v743
    %822 = vmatprep.subr.mxu0 0.0
    %823 = vmatpush1.msra.mxu0 %v744
    %824 = vmatprep.subr.mxu0 0.0
    %825 = vmatpush1.msra.mxu0 %v745
    %826 = vmatprep.subr.mxu0 0.0
    %827 = vmatpush1.msra.mxu0 %v746
    %828 = vmatprep.subr.mxu0 0.0
    %829 = vmatpush1.msra.mxu0 %v747
    %830 = vmatprep.subr.mxu0 0.0
    %831 = vmatpush1.msra.mxu0 %v748
    %832 = vmatprep.subr.mxu0 0.0
    %833 = vmatpush1.msra.mxu0 %v749
    %834 = vmatprep.subr.mxu0 0.0
    %835 = vmatpush1.msra.mxu0 %v750
    %836 = vmatprep.subr.mxu0 0.0
    %837 = vmatpush1.msra.mxu0 %v751
    %838 = vmatprep.subr.mxu0 0.0
    %839 = vmatpush1.msra.mxu0 %v752
    %840 = vmatprep.subr.mxu0 0.0
    %841 = vmatpush1.msra.mxu0 %v753
    %842 = vmatprep.subr.mxu0 0.0
    %843 = vmatpush1.msra.mxu0 %v754
    %844 = vmatprep.subr.mxu0 0.0
    %845 = vmatpush1.msra.mxu0 %v755
    %846 = vmatprep.subr.mxu0 0.0
    %847 = vmatpush1.msra.mxu0 %v756
    %848 = vmatprep.subr.mxu0 0.0
    %849 = vmatpush1.msra.mxu0 %v757
    %850 = vmatprep.subr.mxu0 0.0
    %851 = vmatpush1.msra.mxu0 %v758
    %852 = vmatprep.subr.mxu0 0.0
    %853 = vmatpush1.msra.mxu0 %v759
    %854 = vmatprep.subr.mxu0 0.0
    %855 = vmatpush1.msra.mxu0 %v760
    %856 = vmatprep.subr.mxu0 0.0
    %857 = vmatpush1.msra.mxu0 %v761
    %858 = vmatprep.subr.mxu0 0.0
    %859 = vmatpush1.msra.mxu0 %v762
    %860 = vmatprep.subr.mxu0 0.0
    %861 = vmatpush1.msra.mxu0 %v763
    %862 = vmatprep.subr.mxu0 0.0
    %863 = vmatpush1.msra.mxu0 %v764
    %864 = vmatprep.subr.mxu0 0.0
    %865 = vmatpush1.msra.mxu0 %v765
    %866 = vmatprep.subr.mxu0 0.0
    %867 = vmatpush1.msra.mxu0 %v766
    %868 = vmatprep.subr.mxu0 0.0
    %869 = vmatpush1.msra.mxu0 %v767
    %870 = vmatprep.subr.mxu0 0.0
    %871 = vmatpush1.msra.mxu0 %v768
    %872 = vmatprep.mubr.f32.mxu0 %v734
    %873 = vmatmul.mubr.f32.gmra.mrb[0].mxu0 %v733
    %v874 = vpop.f32.mrb[0].mxu0
    %v875 = vadd.f32 %v806, %v874
    %v876 = vpop.f32.mrb[0].mxu0
    %877 = vdwg.mxu0
    %878 = vmatprep.subr.mxu0 0.0
    %879 = vmatpush1.msra.mxu0 %v769
    %880 = vmatprep.subr.mxu0 0.0
    %881 = vmatpush1.msra.mxu0 %v770
    %882 = vmatprep.subr.mxu0 0.0
    %883 = vmatpush1.msra.mxu0 %v771
    %884 = vmatprep.subr.mxu0 0.0
    %885 = vmatpush1.msra.mxu0 %v772
    %886 = vmatprep.subr.mxu0 0.0
    %887 = vmatpush1.msra.mxu0 %v773
    %888 = vmatprep.subr.mxu0 0.0
    %889 = vmatpush1.msra.mxu0 %v774
    %890 = vmatprep.subr.mxu0 0.0
    %891 = vmatpush1.msra.mxu0 %v775
    %892 = vmatprep.subr.mxu0 0.0
    %893 = vmatpush1.msra.mxu0 %v776
    %894 = vmatprep.subr.mxu0 0.0
    %895 = vmatpush1.msra.mxu0 %v777
    %896 = vmatprep.subr.mxu0 0.0
    %897 = vmatpush1.msra.mxu0 %v778
    %898 = vmatprep.subr.mxu0 0.0
    %899 = vmatpush1.msra.mxu0 %v779
    %900 = vmatprep.subr.mxu0 0.0
    %901 = vmatpush1.msra.mxu0 %v780
    %902 = vmatprep.subr.mxu0 0.0
    %903 = vmatpush1.msra.mxu0 %v781
    %904 = vmatprep.subr.mxu0 0.0
    %905 = vmatpush1.msra.mxu0 %v782
    %906 = vmatprep.subr.mxu0 0.0
    %907 = vmatpush1.msra.mxu0 %v783
    %908 = vmatprep.subr.mxu0 0.0
    %909 = vmatpush1.msra.mxu0 %v784
    %910 = vmatprep.subr.mxu0 0.0
    %911 = vmatpush1.msra.mxu0 %v785
    %912 = vmatprep.subr.mxu0 0.0
    %913 = vmatpush1.msra.mxu0 %v786
    %914 = vmatprep.subr.mxu0 0.0
    %915 = vmatpush1.msra.mxu0 %v787
    %916 = vmatprep.subr.mxu0 0.0
    %917 = vmatpush1.msra.mxu0 %v788
    %918 = vmatprep.subr.mxu0 0.0
    %919 = vmatpush1.msra.mxu0 %v789
    %920 = vmatprep.subr.mxu0 0.0
    %921 = vmatpush1.msra.mxu0 %v790
    %922 = vmatprep.subr.mxu0 0.0
    %923 = vmatpush1.msra.mxu0 %v791
    %924 = vmatprep.subr.mxu0 0.0
    %925 = vmatpush1.msra.mxu0 %v792
    %926 = vmatprep.subr.mxu0 0.0
    %927 = vmatpush1.msra.mxu0 %v793
    %928 = vmatprep.subr.mxu0 0.0
    %929 = vmatpush1.msra.mxu0 %v794
    %930 = vmatprep.subr.mxu0 0.0
    %931 = vmatpush1.msra.mxu0 %v795
    %932 = vmatprep.subr.mxu0 0.0
    %933 = vmatpush1.msra.mxu0 %v796
    %934 = vmatprep.subr.mxu0 0.0
    %935 = vmatpush1.msra.mxu0 %v797
    %936 = vmatprep.subr.mxu0 0.0
    %937 = vmatpush1.msra.mxu0 %v798
    %938 = vmatprep.subr.mxu0 0.0
    %939 = vmatpush1.msra.mxu0 %v799
    %940 = vmatprep.subr.mxu0 0.0
    %941 = vmatpush1.msra.mxu0 %v800
    %942 = vmatprep.mubr.f32.mxu0 %v736
    %943 = vmatmul.mubr.f32.gmra.mrb[0].mxu0 %v735
    %v944 = vpop.f32.mrb[0].mxu0
    %v945 = vadd.f32 %v875, %v944
    %v946 = vpop.f32.mrb[0].mxu0
    %947 = vdwg.mxu0
    %948 = vst [vmem:[%s8] sm:$0xff] %v945
    // Predicated region
    $region34: #{densenet_forward.1} parent=1 // pred_check
      _
    $region35: #{densenet_forward.1} parent=1 // pred_check_branch
      %950 = sbr.rel (0) target = $region37
    $region36: #{densenet_forward.1} parent=1 // pred_region
      _
    $region37: #{densenet_forward.1} parent=1 // pred_fallthru
      _
    // Predicated region
    $region38: #{densenet_forward.1} parent=1 // pred_check
      _
    $region39: #{densenet_forward.1} parent=1 // pred_check_branch
      %952 = sbr.rel (0) target = $region41
    $region40: #{densenet_forward.1} parent=1 // pred_region
      _
    $region41: #{densenet_forward.1} parent=1 // pred_fallthru
      _
    // Predicated region
    $region42: #{densenet_forward.1} parent=1 // pred_check
      _
    $region43: #{densenet_forward.1} parent=1 // pred_check_branch
      %954 = sbr.rel (0) target = $region45
    $region44: #{densenet_forward.1} parent=1 // pred_region
      _
    $region45: #{densenet_forward.1} parent=1 // pred_fallthru
      _
    // Predicated region
    $region46: #{densenet_forward.1} parent=1 // pred_check
      _
    $region47: #{densenet_forward.1} parent=1 // pred_check_branch
      %956 = sbr.rel (0) target = $region49
    $region48: #{densenet_forward.1} parent=1 // pred_region
      _
    $region49: #{densenet_forward.1} parent=1 // pred_fallthru
      _
    %957 = vsyncpa [#allocation5], 1

</llo_original>
